<compile_context>
chip_gen: v6e
topology: v6e:2x2x1
jax: 0.10.0
libtpu: 0.0.40
codegen_flags: <defaults>
</compile_context>

<pallas_src>
import functools

import jax
import jax.numpy as jnp
from jax.experimental import pallas as pl
from jax.experimental.pallas import tpu as pltpu

EPS = 1e-5  # PyTorch BatchNorm default eps


def _invariant_spec(arr):
    """BlockSpec for a grid-invariant (whole-array) parameter input."""
    nd = arr.ndim
    return pl.BlockSpec(arr.shape, lambda n, _nd=nd: (0,) * _nd)


# --------------------------------------------------------------------------
# Kernel 1: per-subset adjacency aggregation
#   xa[n, s] = x.view(N, C*T, V)[n] @ A_norm[s]
# (A_norm is pre-normalized in the wrapper - no per-step norm/sqrt/divide.)
# --------------------------------------------------------------------------
def _gcn_adj_kernel(x_ref, a_ref, o_ref, *, S):
    x = x_ref[0]                                              # (Cin*T, V)
    for s in range(S):                                        # static unroll
        o_ref[0, s] = jnp.dot(x, a_ref[s], preferred_element_type=jnp.float32)


def gcn_adjacency(x_ctv, A_norm):
    N, CT, V = x_ctv.shape
    S = A_norm.shape[0]
    return pl.pallas_call(
        functools.partial(_gcn_adj_kernel, S=S),
        out_shape=jax.ShapeDtypeStruct((N, S, CT, V), jnp.float32),
        grid=(N,),
        in_specs=[pl.BlockSpec((1, CT, V), lambda n: (n, 0, 0)),
                  pl.BlockSpec((S, V, V), lambda n: (0, 0, 0))],
        out_specs=pl.BlockSpec((1, S, CT, V), lambda n: (n, 0, 0, 0)),
        compiler_params=pltpu.CompilerParams(
            dimension_semantics=("parallel",)),
    )(x_ctv, A_norm)


# --------------------------------------------------------------------------
# Kernel 2: fused  (GCN 1x1 convs + BN + down + ReLU)
#                  -> spatial att -> temporal att -> channel att
#                  -> unit_tcn (K-tap temporal conv + BN) + residual + ReLU
# One grid step = one sample; every intermediate stays in VMEM / vregs.
# --------------------------------------------------------------------------
def _fused_kernel(xa_ref, x_ref, wg_ref, wd_ref, wt_ref, wr_ref,
                  fc1_ref, fc2_ref, bias_ref, e_ref, et_ref,
                  o_ref, gp_ref, *, T, V, K, pad, Cout):
    TV = T * V
    xa = xa_ref[0]                                            # (S*Cin, TV)
    x = x_ref[0]                                              # (Cin,   TV)
    b_gcn = bias_ref[:, 0:1]                                  # folded gcn+down bias
    b_tcn = bias_ref[:, 1:2]                                  # folded tcn+res bias
    b_fc1 = bias_ref[:, 2:3]
    b_fc2 = bias_ref[:, 3:4]

    # ---- unit_gcn: sum_s conv_s(xa_s) + BN (folded) + down(x) (folded), ReLU
    g = jnp.dot(wg_ref[...], xa, preferred_element_type=jnp.float32)
    g = g + jnp.dot(wd_ref[...], x, preferred_element_type=jnp.float32)
    g = jnp.maximum(g + b_gcn, 0.0)                           # (Cout, TV)

    # ---- SpatialAttention: per-channel sigmoid(mean over T*V)
    g = g * jax.nn.sigmoid(jnp.mean(g, axis=-1, keepdims=True))

    # ---- TemporalAttention (torch .view(N, C*V, T) flat-group semantics):
    # group means via a (TV, V) grouping matmul, expand back via its 0/1 pair.
    grp_mean = jnp.dot(g, et_ref[...], preferred_element_type=jnp.float32)  # (Cout, V)
    g = g * jnp.dot(jax.nn.sigmoid(grp_mean), e_ref[...],
                    preferred_element_type=jnp.float32)

    # ---- ChannelAttention: sigmoid(fc2(fc1(mean_{T,V}(g))))
    avg = jnp.mean(g, axis=-1, keepdims=True)                 # (Cout, 1)
    avg_rep = jnp.broadcast_to(avg, (Cout, V))                # narrow, V lanes
    h = jnp.dot(fc1_ref[...], avg_rep, preferred_element_type=jnp.float32) + b_fc1
    h = jnp.dot(fc2_ref[...], h, preferred_element_type=jnp.float32) + b_fc2
    g = g * jax.nn.sigmoid(h[:, 0:1])

    # ---- unit_tcn (kernel (K,1), zero pad, stride 1) + residual, folded BN.
    # Keep a zero-padded copy of g in VMEM scratch and do K dot-accumulates
    # over shifted lane windows (shift by one time step == V lanes).
    if pad > 0:
        zeros_edge = jnp.zeros((Cout, pad * V), jnp.float32)
        gp_ref[:, 0:pad * V] = zeros_edge
        gp_ref[:, pad * V + TV:(T + 2 * pad) * V] = zeros_edge
    gp_ref[:, pad * V:pad * V + TV] = g

    acc = jnp.dot(wr_ref[...], x, preferred_element_type=jnp.float32) + b_tcn
    for k in range(K):                                        # static unroll
        win = gp_ref[:, k * V:k * V + TV]                     # (Cout, TV)
        acc = acc + jnp.dot(wt_ref[k], win, preferred_element_type=jnp.float32)

    o_ref[0] = jnp.maximum(acc, 0.0)                          # lane-dense store


def fused_gcn_att_tcn(xa_flat, x_flat, wg, wd, wt, wr, fc1_w, fc2_w,
                      bias_pack, E, Et, *, T, V, K, pad):
    N, SCin, TV = xa_flat.shape
    Cin = x_flat.shape[1]
    Cout = wg.shape[0]
    params = [wg, wd, wt, wr, fc1_w, fc2_w, bias_pack, E, Et]
    kernel = functools.partial(_fused_kernel, T=T, V=V, K=K, pad=pad, Cout=Cout)
    return pl.pallas_call(
        kernel,
        out_shape=jax.ShapeDtypeStruct((N, Cout, TV), jnp.float32),
        grid=(N,),
        in_specs=[pl.BlockSpec((1, SCin, TV), lambda n: (n, 0, 0)),
                  pl.BlockSpec((1, Cin, TV), lambda n: (n, 0, 0))]
                 + [_invariant_spec(p) for p in params],
        out_specs=pl.BlockSpec((1, Cout, TV), lambda n: (n, 0, 0)),
        scratch_shapes=[pltpu.VMEM((Cout, (T + 2 * pad) * V), jnp.float32)],
        compiler_params=pltpu.CompilerParams(
            dimension_semantics=("parallel",),
            vmem_limit_bytes=32 * 1024 * 1024),
    )(xa_flat, x_flat, *params)


# --------------------------------------------------------------------------
# Trace-time parameter preparation (all hoisted out of the kernels)
# --------------------------------------------------------------------------
def _fold_bn(w, b, bn):
    gamma, beta, mean, var = bn
    scale = gamma * jax.lax.rsqrt(var + EPS)
    return w * scale[:, None], scale * (b - mean) + beta


def tcn_gcn_unit_forward(x, params):
    N, Cin, T, V = x.shape
    S, Cout, _ = params['conv_d_w'].shape
    K = params['tcn_w'].shape[2]
    pad = (K - 1) // 2
    TV = T * V

    # -- adjacency: L2-normalize once (torch.norm(A, 2, dim=1) + 1e-4) --------
    A = params['A']
    A_norm = A / (jnp.sqrt(jnp.sum(A * A, axis=1, keepdims=True)) + 1e-4)

    # -- fold BatchNorms into conv weights / biases ---------------------------
    w_cat = jnp.transpose(params['conv_d_w'], (1, 0, 2)).reshape(Cout, S * Cin)
    b_sum = jnp.sum(params['conv_d_b'], axis=0)               # biases add over subsets
    wg, bg = _fold_bn(w_cat, b_sum, params['gcn_bn'])
    wd, bd = _fold_bn(params['down_w'], params['down_b'], params['down_bn'])
    wr, br = _fold_bn(params['res_w'], params['res_b'], params['res_bn'])

    g_t, beta_t, m_t, v_t = params['tcn_bn']
    scale_t = g_t * jax.lax.rsqrt(v_t + EPS)
    wt = jnp.transpose(params['tcn_w'] * scale_t[:, None, None], (2, 0, 1))  # (K, Co, Co)
    bt = scale_t * (params['tcn_b'] - m_t) + beta_t

    # pack the 4 remaining per-output-channel vectors into one input
    bias_pack = jnp.stack([bg + bd, bt + br, params['fc1_b'], params['fc2_b']],
                          axis=1).astype(jnp.float32)         # (Cout, 4)

    # temporal-attention grouping matrices (flat-view groups of T lanes)
    pidx = jnp.arange(TV) // T
    E = (pidx[None, :] == jnp.arange(V)[:, None]).astype(jnp.float32)  # (V, TV)
    Et = E.T / float(T)                                                # (TV, V)

    x_ctv = x.reshape(N, Cin * T, V)                          # torch x.view(N, C*T, V)
    x_flat = x.reshape(N, Cin, TV)

    # ---- kernel 1: adjacency aggregation ----
    xa = gcn_adjacency(x_ctv, A_norm)                         # (N, S, Cin*T, V)
    xa_flat = xa.reshape(N, S * Cin, TV)                      # free row-major reshape

    # ---- kernel 2: everything else, fused ----
    y = fused_gcn_att_tcn(xa_flat, x_flat, wg, wd, wt, wr,
                          params['fc1_w'], params['fc2_w'],
                          bias_pack, E, Et, T=T, V=V, K=K, pad=pad)
    return y.reshape(N, Cout, T, V)


# --------------------------------------------------------------------------
# Deterministic parameter initialisation (shapes from the PyTorch __init__)
# --------------------------------------------------------------------------
def init_params(key, Cin, Cout, S, V, K=5):
    kit = iter(jax.random.split(key, 40))

    def u(shape, lo=-0.5, hi=0.5):
        return jax.random.uniform(next(kit), shape, jnp.float32, lo, hi)

    def bn_params():
        return (u((Cout,), 0.5, 1.5),    # gamma
                u((Cout,), -0.2, 0.2),   # beta
                u((Cout,), -0.2, 0.2),   # running mean
                u((Cout,), 0.5, 1.5))    # running var

    return dict(
        A=u((S, V, V), 0.0, 1.0),          # PA (adaptive adjacency)
        conv_d_w=u((S, Cout, Cin)),        # S x Conv2d(in, out, 1) weights
        conv_d_b=u((S, Cout)),
        gcn_bn=bn_params(),                # unit_gcn.bn
        down_w=u((Cout, Cin)),             # unit_gcn.down conv1x1 + BN
        down_b=u((Cout,)),
        down_bn=bn_params(),
        fc1_w=u((Cout, Cout)),             # ChannelAttention
        fc1_b=u((Cout,)),
        fc2_w=u((Cout, Cout)),
        fc2_b=u((Cout,)),
        tcn_w=u((Cout, Cout, K)),          # unit_tcn conv (K,1)
        tcn_b=u((Cout,)),
        tcn_bn=bn_params(),
        res_w=u((Cout, Cin)),              # residual unit_tcn kernel_size=1
        res_b=u((Cout,)),
        res_bn=bn_params(),
    )


if __name__ == "__main__":
    N, Cin, Cout, T, V, S = 2, 4, 16, 16, 16, 3
    key = jax.random.PRNGKey(0)
    kx, kp = jax.random.split(key)
    x = jax.random.normal(kx, (N, Cin, T, V), jnp.float32)
    params = init_params(kp, Cin, Cout, S, V)

    y = jax.jit(tcn_gcn_unit_forward)(x, params)
    y = jax.block_until_ready(y)
    assert y.shape == (N, Cout, T, V) and y.dtype == jnp.float32
    print("KERNEL_OK")
</pallas_src>

<mosaic_0001>
module attributes {stable_mosaic.version = 11 : i64} {
  func.func @_gcn_adj_kernel(%arg0: i32, %arg1: memref<1x64x16xf32, #tpu.memory_space<vmem>>, %arg2: memref<3x16x16xf32, #tpu.memory_space<vmem>>, %arg3: memref<1x3x64x16xf32, #tpu.memory_space<vmem>>) attributes {dimension_semantics = [#tpu.dimension_semantics<parallel>], iteration_bounds = array<i64: 2>, scalar_prefetch = 0 : i64, scratch_operands = 0 : i64, tpu.core_type = #tpu.core_type<tc>, window_params = [{transform_indices = @transform_0, window_bounds = array<i64: 1, 64, 16>}, {pipeline_mode = #tpu.pipeline_mode<synchronous>, transform_indices = @transform_1, window_bounds = array<i64: 3, 16, 16>}, {transform_indices = @transform_2, window_bounds = array<i64: 1, 3, 64, 16>}]} {
    %c0 = arith.constant 0 : index
    %c0_0 = arith.constant 0 : index
    %c0_1 = arith.constant 0 : index
    %0 = vector.load %arg1[%c0, %c0_0, %c0_1] : memref<1x64x16xf32, #tpu.memory_space<vmem>>, vector<1x64x16xf32>
    %1 = vector.shape_cast %0 : vector<1x64x16xf32> to vector<64x16xf32>
    %c0_2 = arith.constant 0 : index
    %c0_3 = arith.constant 0 : index
    %c0_4 = arith.constant 0 : index
    %2 = vector.load %arg2[%c0_2, %c0_3, %c0_4] : memref<3x16x16xf32, #tpu.memory_space<vmem>>, vector<1x16x16xf32>
    %3 = vector.shape_cast %2 : vector<1x16x16xf32> to vector<16x16xf32>
    %cst = arith.constant dense<0.000000e+00> : vector<64x16xf32>
    %4 = tpu.matmul %1, %3, %cst {dimension_numbers = #tpu.dot_dimension_numbers<[1], [0], [0], [1], [0, 0, 1, 1], [], []>} : vector<64x16xf32>, vector<16x16xf32>, vector<64x16xf32> -> vector<64x16xf32>
    %c0_5 = arith.constant 0 : index
    %c0_6 = arith.constant 0 : index
    %c0_7 = arith.constant 0 : index
    %c0_8 = arith.constant 0 : index
    %5 = vector.load %arg3[%c0_5, %c0_6, %c0_7, %c0_8] : memref<1x3x64x16xf32, #tpu.memory_space<vmem>>, vector<1x1x64x16xf32>
    %6 = vector.shape_cast %5 : vector<1x1x64x16xf32> to vector<64x16xf32>
    %7 = vector.shape_cast %4 : vector<64x16xf32> to vector<1x1x64x16xf32>
    tpu.vector_store %arg3[%c0_5, %c0_6, %c0_7, %c0_8], %7 {strides = array<i32>} : memref<1x3x64x16xf32, #tpu.memory_space<vmem>>, vector<1x1x64x16xf32>,
    %c1 = arith.constant 1 : index
    %c0_9 = arith.constant 0 : index
    %c0_10 = arith.constant 0 : index
    %8 = vector.load %arg2[%c1, %c0_9, %c0_10] : memref<3x16x16xf32, #tpu.memory_space<vmem>>, vector<1x16x16xf32>
    %9 = vector.shape_cast %8 : vector<1x16x16xf32> to vector<16x16xf32>
    %cst_11 = arith.constant dense<0.000000e+00> : vector<64x16xf32>
    %10 = tpu.matmul %1, %9, %cst_11 {dimension_numbers = #tpu.dot_dimension_numbers<[1], [0], [0], [1], [0, 0, 1, 1], [], []>} : vector<64x16xf32>, vector<16x16xf32>, vector<64x16xf32> -> vector<64x16xf32>
    %c0_12 = arith.constant 0 : index
    %c1_13 = arith.constant 1 : index
    %c0_14 = arith.constant 0 : index
    %c0_15 = arith.constant 0 : index
    %11 = vector.load %arg3[%c0_12, %c1_13, %c0_14, %c0_15] : memref<1x3x64x16xf32, #tpu.memory_space<vmem>>, vector<1x1x64x16xf32>
    %12 = vector.shape_cast %11 : vector<1x1x64x16xf32> to vector<64x16xf32>
    %13 = vector.shape_cast %10 : vector<64x16xf32> to vector<1x1x64x16xf32>
    tpu.vector_store %arg3[%c0_12, %c1_13, %c0_14, %c0_15], %13 {strides = array<i32>} : memref<1x3x64x16xf32, #tpu.memory_space<vmem>>, vector<1x1x64x16xf32>,
    %c2 = arith.constant 2 : index
    %c0_16 = arith.constant 0 : index
    %c0_17 = arith.constant 0 : index
    %14 = vector.load %arg2[%c2, %c0_16, %c0_17] : memref<3x16x16xf32, #tpu.memory_space<vmem>>, vector<1x16x16xf32>
    %15 = vector.shape_cast %14 : vector<1x16x16xf32> to vector<16x16xf32>
    %cst_18 = arith.constant dense<0.000000e+00> : vector<64x16xf32>
    %16 = tpu.matmul %1, %15, %cst_18 {dimension_numbers = #tpu.dot_dimension_numbers<[1], [0], [0], [1], [0, 0, 1, 1], [], []>} : vector<64x16xf32>, vector<16x16xf32>, vector<64x16xf32> -> vector<64x16xf32>
    %c0_19 = arith.constant 0 : index
    %c2_20 = arith.constant 2 : index
    %c0_21 = arith.constant 0 : index
    %c0_22 = arith.constant 0 : index
    %17 = vector.load %arg3[%c0_19, %c2_20, %c0_21, %c0_22] : memref<1x3x64x16xf32, #tpu.memory_space<vmem>>, vector<1x1x64x16xf32>
    %18 = vector.shape_cast %17 : vector<1x1x64x16xf32> to vector<64x16xf32>
    %19 = vector.shape_cast %16 : vector<64x16xf32> to vector<1x1x64x16xf32>
    tpu.vector_store %arg3[%c0_19, %c2_20, %c0_21, %c0_22], %19 {strides = array<i32>} : memref<1x3x64x16xf32, #tpu.memory_space<vmem>>, vector<1x1x64x16xf32>,
    return
  }
  func.func @transform_0(%arg0: i32) -> (i32, i32, i32) {
    %c0_i32 = arith.constant 0 : i32
    %c0_i32_0 = arith.constant 0 : i32
    %c0_i32_1 = arith.constant 0 : i32
    return %arg0, %c0_i32, %c0_i32_0 : i32, i32, i32
  }
  func.func @transform_1(%arg0: i32) -> (i32, i32, i32) {
    %c0_i32 = arith.constant 0 : i32
    %c0_i32_0 = arith.constant 0 : i32
    %c0_i32_1 = arith.constant 0 : i32
    %c0_i32_2 = arith.constant 0 : i32
    return %c0_i32, %c0_i32_0, %c0_i32_1 : i32, i32, i32
  }
  func.func @transform_2(%arg0: i32) -> (i32, i32, i32, i32) {
    %c0_i32 = arith.constant 0 : i32
    %c0_i32_0 = arith.constant 0 : i32
    %c0_i32_1 = arith.constant 0 : i32
    %c0_i32_2 = arith.constant 0 : i32
    return %arg0, %c0_i32, %c0_i32_0, %c0_i32_1 : i32, i32, i32, i32
  }
}

module attributes {stable_mosaic.version = 11 : i64} {
  func.func @_fused_kernel(%arg0: i32, %arg1: memref<1x12x256xf32, #tpu.memory_space<vmem>>, %arg2: memref<1x4x256xf32, #tpu.memory_space<vmem>>, %arg3: memref<16x12xf32, #tpu.memory_space<vmem>>, %arg4: memref<16x4xf32, #tpu.memory_space<vmem>>, %arg5: memref<5x16x16xf32, #tpu.memory_space<vmem>>, %arg6: memref<16x4xf32, #tpu.memory_space<vmem>>, %arg7: memref<16x16xf32, #tpu.memory_space<vmem>>, %arg8: memref<16x16xf32, #tpu.memory_space<vmem>>, %arg9: memref<16x4xf32, #tpu.memory_space<vmem>>, %arg10: memref<16x256xf32, #tpu.memory_space<vmem>>, %arg11: memref<256x16xf32, #tpu.memory_space<vmem>>, %arg12: memref<1x16x256xf32, #tpu.memory_space<vmem>>, %arg13: memref<16x320xf32, #tpu.memory_space<vmem>>) attributes {dimension_semantics = [#tpu.dimension_semantics<parallel>], iteration_bounds = array<i64: 2>, scalar_prefetch = 0 : i64, scratch_operands = 1 : i64, tpu.core_type = #tpu.core_type<tc>, window_params = [{transform_indices = @transform_0, window_bounds = array<i64: 1, 12, 256>}, {transform_indices = @transform_1, window_bounds = array<i64: 1, 4, 256>}, {pipeline_mode = #tpu.pipeline_mode<synchronous>, transform_indices = @transform_2, window_bounds = array<i64: 16, 12>}, {pipeline_mode = #tpu.pipeline_mode<synchronous>, transform_indices = @transform_3, window_bounds = array<i64: 16, 4>}, {pipeline_mode = #tpu.pipeline_mode<synchronous>, transform_indices = @transform_4, window_bounds = array<i64: 5, 16, 16>}, {pipeline_mode = #tpu.pipeline_mode<synchronous>, transform_indices = @transform_5, window_bounds = array<i64: 16, 4>}, {pipeline_mode = #tpu.pipeline_mode<synchronous>, transform_indices = @transform_6, window_bounds = array<i64: 16, 16>}, {pipeline_mode = #tpu.pipeline_mode<synchronous>, transform_indices = @transform_7, window_bounds = array<i64: 16, 16>}, {pipeline_mode = #tpu.pipeline_mode<synchronous>, transform_indices = @transform_8, window_bounds = array<i64: 16, 4>}, {pipeline_mode = #tpu.pipeline_mode<synchronous>, transform_indices = @transform_9, window_bounds = array<i64: 16, 256>}, {pipeline_mode = #tpu.pipeline_mode<synchronous>, transform_indices = @transform_10, window_bounds = array<i64: 256, 16>}, {transform_indices = @transform_11, window_bounds = array<i64: 1, 16, 256>}]} {
    %c0 = arith.constant 0 : index
    %c0_0 = arith.constant 0 : index
    %c0_1 = arith.constant 0 : index
    %0 = vector.load %arg1[%c0, %c0_0, %c0_1] : memref<1x12x256xf32, #tpu.memory_space<vmem>>, vector<1x12x256xf32>
    %1 = vector.shape_cast %0 : vector<1x12x256xf32> to vector<12x256xf32>
    %c0_2 = arith.constant 0 : index
    %c0_3 = arith.constant 0 : index
    %c0_4 = arith.constant 0 : index
    %2 = vector.load %arg2[%c0_2, %c0_3, %c0_4] : memref<1x4x256xf32, #tpu.memory_space<vmem>>, vector<1x4x256xf32>
    %3 = vector.shape_cast %2 : vector<1x4x256xf32> to vector<4x256xf32>
    %c0_5 = arith.constant 0 : index
    %c0_6 = arith.constant 0 : index
    %4 = vector.load %arg9[%c0_5, %c0_6] : memref<16x4xf32, #tpu.memory_space<vmem>>, vector<16x1xf32>
    %c0_7 = arith.constant 0 : index
    %c1 = arith.constant 1 : index
    %5 = vector.load %arg9[%c0_7, %c1] : memref<16x4xf32, #tpu.memory_space<vmem>>, vector<16x1xf32>
    %c0_8 = arith.constant 0 : index
    %c2 = arith.constant 2 : index
    %6 = vector.load %arg9[%c0_8, %c2] : memref<16x4xf32, #tpu.memory_space<vmem>>, vector<16x1xf32>
    %c0_9 = arith.constant 0 : index
    %c3 = arith.constant 3 : index
    %7 = vector.load %arg9[%c0_9, %c3] : memref<16x4xf32, #tpu.memory_space<vmem>>, vector<16x1xf32>
    %c0_10 = arith.constant 0 : index
    %c0_11 = arith.constant 0 : index
    %8 = vector.load %arg3[%c0_10, %c0_11] : memref<16x12xf32, #tpu.memory_space<vmem>>, vector<16x12xf32>
    %cst = arith.constant dense<0.000000e+00> : vector<16x256xf32>
    %9 = tpu.matmul %8, %1, %cst {dimension_numbers = #tpu.dot_dimension_numbers<[1], [0], [0], [1], [0, 0, 1, 1], [], []>} : vector<16x12xf32>, vector<12x256xf32>, vector<16x256xf32> -> vector<16x256xf32>
    %c0_12 = arith.constant 0 : index
    %c0_13 = arith.constant 0 : index
    %10 = vector.load %arg4[%c0_12, %c0_13] : memref<16x4xf32, #tpu.memory_space<vmem>>, vector<16x4xf32>
    %cst_14 = arith.constant dense<0.000000e+00> : vector<16x256xf32>
    %11 = tpu.matmul %10, %3, %cst_14 {dimension_numbers = #tpu.dot_dimension_numbers<[1], [0], [0], [1], [0, 0, 1, 1], [], []>} : vector<16x4xf32>, vector<4x256xf32>, vector<16x256xf32> -> vector<16x256xf32>
    %12 = arith.addf %9, %11 : vector<16x256xf32>
    %13 = vector.broadcast %4 : vector<16x1xf32> to vector<16x256xf32>
    %14 = arith.addf %12, %13 : vector<16x256xf32>
    %cst_15 = arith.constant 0.000000e+00 : f32
    %15 = vector.broadcast %cst_15 : f32 to vector<16x256xf32>
    %16 = arith.maximumf %14, %15 : vector<16x256xf32>
    %cst_16 = arith.constant dense<0.000000e+00> : vector<16xf32>
    %17 = vector.multi_reduction <add>, %16, %cst_16 [1] : vector<16x256xf32> to vector<16xf32>
    %18 = vector.shape_cast %17 : vector<16xf32> to vector<16x1xf32>
    %cst_17 = arith.constant 2.560000e+02 : f32
    %19 = vector.broadcast %cst_17 : f32 to vector<16x1xf32>
    %20 = arith.divf %18, %19 : vector<16x1xf32>
    %21 = arith.negf %20 : vector<16x1xf32>
    %22 = math.exp %21 : vector<16x1xf32>
    %cst_18 = arith.constant 1.000000e+00 : f32
    %23 = vector.broadcast %cst_18 : f32 to vector<16x1xf32>
    %24 = arith.addf %23, %22 : vector<16x1xf32>
    %25 = arith.divf %23, %24 : vector<16x1xf32>
    %26 = vector.broadcast %25 : vector<16x1xf32> to vector<16x256xf32>
    %27 = arith.mulf %16, %26 : vector<16x256xf32>
    %c0_19 = arith.constant 0 : index
    %c0_20 = arith.constant 0 : index
    %28 = vector.load %arg11[%c0_19, %c0_20] : memref<256x16xf32, #tpu.memory_space<vmem>>, vector<256x16xf32>
    %cst_21 = arith.constant dense<0.000000e+00> : vector<16x16xf32>
    %29 = tpu.matmul %27, %28, %cst_21 {dimension_numbers = #tpu.dot_dimension_numbers<[1], [0], [0], [1], [0, 0, 1, 1], [], []>} : vector<16x256xf32>, vector<256x16xf32>, vector<16x16xf32> -> vector<16x16xf32>
    %30 = arith.negf %29 : vector<16x16xf32>
    %31 = math.exp %30 : vector<16x16xf32>
    %cst_22 = arith.constant 1.000000e+00 : f32
    %32 = vector.broadcast %cst_22 : f32 to vector<16x16xf32>
    %33 = arith.addf %32, %31 : vector<16x16xf32>
    %34 = arith.divf %32, %33 : vector<16x16xf32>
    %c0_23 = arith.constant 0 : index
    %c0_24 = arith.constant 0 : index
    %35 = vector.load %arg10[%c0_23, %c0_24] : memref<16x256xf32, #tpu.memory_space<vmem>>, vector<16x256xf32>
    %cst_25 = arith.constant dense<0.000000e+00> : vector<16x256xf32>
    %36 = tpu.matmul %34, %35, %cst_25 {dimension_numbers = #tpu.dot_dimension_numbers<[1], [0], [0], [1], [0, 0, 1, 1], [], []>} : vector<16x16xf32>, vector<16x256xf32>, vector<16x256xf32> -> vector<16x256xf32>
    %37 = arith.mulf %27, %36 : vector<16x256xf32>
    %cst_26 = arith.constant dense<0.000000e+00> : vector<16xf32>
    %38 = vector.multi_reduction <add>, %37, %cst_26 [1] : vector<16x256xf32> to vector<16xf32>
    %39 = vector.shape_cast %38 : vector<16xf32> to vector<16x1xf32>
    %cst_27 = arith.constant 2.560000e+02 : f32
    %40 = vector.broadcast %cst_27 : f32 to vector<16x1xf32>
    %41 = arith.divf %39, %40 : vector<16x1xf32>
    %42 = vector.shape_cast %41 : vector<16x1xf32> to vector<16x1xf32>
    %43 = vector.broadcast %42 : vector<16x1xf32> to vector<16x16xf32>
    %c0_28 = arith.constant 0 : index
    %c0_29 = arith.constant 0 : index
    %44 = vector.load %arg7[%c0_28, %c0_29] : memref<16x16xf32, #tpu.memory_space<vmem>>, vector<16x16xf32>
    %cst_30 = arith.constant dense<0.000000e+00> : vector<16x16xf32>
    %45 = tpu.matmul %44, %43, %cst_30 {dimension_numbers = #tpu.dot_dimension_numbers<[1], [0], [0], [1], [0, 0, 1, 1], [], []>} : vector<16x16xf32>, vector<16x16xf32>, vector<16x16xf32> -> vector<16x16xf32>
    %46 = vector.broadcast %6 : vector<16x1xf32> to vector<16x16xf32>
    %47 = arith.addf %45, %46 : vector<16x16xf32>
    %c0_31 = arith.constant 0 : index
    %c0_32 = arith.constant 0 : index
    %48 = vector.load %arg8[%c0_31, %c0_32] : memref<16x16xf32, #tpu.memory_space<vmem>>, vector<16x16xf32>
    %cst_33 = arith.constant dense<0.000000e+00> : vector<16x16xf32>
    %49 = tpu.matmul %48, %47, %cst_33 {dimension_numbers = #tpu.dot_dimension_numbers<[1], [0], [0], [1], [0, 0, 1, 1], [], []>} : vector<16x16xf32>, vector<16x16xf32>, vector<16x16xf32> -> vector<16x16xf32>
    %50 = vector.broadcast %7 : vector<16x1xf32> to vector<16x16xf32>
    %51 = arith.addf %49, %50 : vector<16x16xf32>
    %52 = vector.extract_strided_slice %51 {offsets = [0, 0], sizes = [16, 1], strides = [1, 1]} : vector<16x16xf32> to vector<16x1xf32>
    %53 = arith.negf %52 : vector<16x1xf32>
    %54 = math.exp %53 : vector<16x1xf32>
    %cst_34 = arith.constant 1.000000e+00 : f32
    %55 = vector.broadcast %cst_34 : f32 to vector<16x1xf32>
    %56 = arith.addf %55, %54 : vector<16x1xf32>
    %57 = arith.divf %55, %56 : vector<16x1xf32>
    %58 = vector.broadcast %57 : vector<16x1xf32> to vector<16x256xf32>
    %59 = arith.mulf %37, %58 : vector<16x256xf32>
    %cst_35 = arith.constant 0.000000e+00 : f32
    %60 = vector.broadcast %cst_35 : f32 to vector<16x32xf32>
    %c0_36 = arith.constant 0 : index
    %c0_37 = arith.constant 0 : index
    %61 = vector.load %arg13[%c0_36, %c0_37] : memref<16x320xf32, #tpu.memory_space<vmem>>, vector<16x32xf32>
    tpu.vector_store %arg13[%c0_36, %c0_37], %60 {strides = array<i32>} : memref<16x320xf32, #tpu.memory_space<vmem>>, vector<16x32xf32>,
    %c0_38 = arith.constant 0 : index
    %c288 = arith.constant 288 : index
    %62 = vector.load %arg13[%c0_38, %c288] : memref<16x320xf32, #tpu.memory_space<vmem>>, vector<16x32xf32>
    tpu.vector_store %arg13[%c0_38, %c288], %60 {strides = array<i32>} : memref<16x320xf32, #tpu.memory_space<vmem>>, vector<16x32xf32>,
    %c0_39 = arith.constant 0 : index
    %c32 = arith.constant 32 : index
    %63 = vector.load %arg13[%c0_39, %c32] : memref<16x320xf32, #tpu.memory_space<vmem>>, vector<16x256xf32>
    tpu.vector_store %arg13[%c0_39, %c32], %59 {strides = array<i32>} : memref<16x320xf32, #tpu.memory_space<vmem>>, vector<16x256xf32>,
    %c0_40 = arith.constant 0 : index
    %c0_41 = arith.constant 0 : index
    %64 = vector.load %arg6[%c0_40, %c0_41] : memref<16x4xf32, #tpu.memory_space<vmem>>, vector<16x4xf32>
    %cst_42 = arith.constant dense<0.000000e+00> : vector<16x256xf32>
    %65 = tpu.matmul %64, %3, %cst_42 {dimension_numbers = #tpu.dot_dimension_numbers<[1], [0], [0], [1], [0, 0, 1, 1], [], []>} : vector<16x4xf32>, vector<4x256xf32>, vector<16x256xf32> -> vector<16x256xf32>
    %66 = vector.broadcast %5 : vector<16x1xf32> to vector<16x256xf32>
    %67 = arith.addf %65, %66 : vector<16x256xf32>
    %c0_43 = arith.constant 0 : index
    %c0_44 = arith.constant 0 : index
    %68 = vector.load %arg13[%c0_43, %c0_44] : memref<16x320xf32, #tpu.memory_space<vmem>>, vector<16x256xf32>
    %c0_45 = arith.constant 0 : index
    %c0_46 = arith.constant 0 : index
    %c0_47 = arith.constant 0 : index
    %69 = vector.load %arg5[%c0_45, %c0_46, %c0_47] : memref<5x16x16xf32, #tpu.memory_space<vmem>>, vector<1x16x16xf32>
    %70 = vector.shape_cast %69 : vector<1x16x16xf32> to vector<16x16xf32>
    %cst_48 = arith.constant dense<0.000000e+00> : vector<16x256xf32>
    %71 = tpu.matmul %70, %68, %cst_48 {dimension_numbers = #tpu.dot_dimension_numbers<[1], [0], [0], [1], [0, 0, 1, 1], [], []>} : vector<16x16xf32>, vector<16x256xf32>, vector<16x256xf32> -> vector<16x256xf32>
    %72 = arith.addf %67, %71 : vector<16x256xf32>
    %c0_49 = arith.constant 0 : index
    %c16 = arith.constant 16 : index
    %73 = vector.load %arg13[%c0_49, %c16] : memref<16x320xf32, #tpu.memory_space<vmem>>, vector<16x256xf32>
    %c1_50 = arith.constant 1 : index
    %c0_51 = arith.constant 0 : index
    %c0_52 = arith.constant 0 : index
    %74 = vector.load %arg5[%c1_50, %c0_51, %c0_52] : memref<5x16x16xf32, #tpu.memory_space<vmem>>, vector<1x16x16xf32>
    %75 = vector.shape_cast %74 : vector<1x16x16xf32> to vector<16x16xf32>
    %cst_53 = arith.constant dense<0.000000e+00> : vector<16x256xf32>
    %76 = tpu.matmul %75, %73, %cst_53 {dimension_numbers = #tpu.dot_dimension_numbers<[1], [0], [0], [1], [0, 0, 1, 1], [], []>} : vector<16x16xf32>, vector<16x256xf32>, vector<16x256xf32> -> vector<16x256xf32>
    %77 = arith.addf %72, %76 : vector<16x256xf32>
    %c0_54 = arith.constant 0 : index
    %c32_55 = arith.constant 32 : index
    %78 = vector.load %arg13[%c0_54, %c32_55] : memref<16x320xf32, #tpu.memory_space<vmem>>, vector<16x256xf32>
    %c2_56 = arith.constant 2 : index
    %c0_57 = arith.constant 0 : index
    %c0_58 = arith.constant 0 : index
    %79 = vector.load %arg5[%c2_56, %c0_57, %c0_58] : memref<5x16x16xf32, #tpu.memory_space<vmem>>, vector<1x16x16xf32>
    %80 = vector.shape_cast %79 : vector<1x16x16xf32> to vector<16x16xf32>
    %cst_59 = arith.constant dense<0.000000e+00> : vector<16x256xf32>
    %81 = tpu.matmul %80, %78, %cst_59 {dimension_numbers = #tpu.dot_dimension_numbers<[1], [0], [0], [1], [0, 0, 1, 1], [], []>} : vector<16x16xf32>, vector<16x256xf32>, vector<16x256xf32> -> vector<16x256xf32>
    %82 = arith.addf %77, %81 : vector<16x256xf32>
    %c0_60 = arith.constant 0 : index
    %c48 = arith.constant 48 : index
    %83 = vector.load %arg13[%c0_60, %c48] : memref<16x320xf32, #tpu.memory_space<vmem>>, vector<16x256xf32>
    %c3_61 = arith.constant 3 : index
    %c0_62 = arith.constant 0 : index
    %c0_63 = arith.constant 0 : index
    %84 = vector.load %arg5[%c3_61, %c0_62, %c0_63] : memref<5x16x16xf32, #tpu.memory_space<vmem>>, vector<1x16x16xf32>
    %85 = vector.shape_cast %84 : vector<1x16x16xf32> to vector<16x16xf32>
    %cst_64 = arith.constant dense<0.000000e+00> : vector<16x256xf32>
    %86 = tpu.matmul %85, %83, %cst_64 {dimension_numbers = #tpu.dot_dimension_numbers<[1], [0], [0], [1], [0, 0, 1, 1], [], []>} : vector<16x16xf32>, vector<16x256xf32>, vector<16x256xf32> -> vector<16x256xf32>
    %87 = arith.addf %82, %86 : vector<16x256xf32>
    %c0_65 = arith.constant 0 : index
    %c64 = arith.constant 64 : index
    %88 = vector.load %arg13[%c0_65, %c64] : memref<16x320xf32, #tpu.memory_space<vmem>>, vector<16x256xf32>
    %c4 = arith.constant 4 : index
    %c0_66 = arith.constant 0 : index
    %c0_67 = arith.constant 0 : index
    %89 = vector.load %arg5[%c4, %c0_66, %c0_67] : memref<5x16x16xf32, #tpu.memory_space<vmem>>, vector<1x16x16xf32>
    %90 = vector.shape_cast %89 : vector<1x16x16xf32> to vector<16x16xf32>
    %cst_68 = arith.constant dense<0.000000e+00> : vector<16x256xf32>
    %91 = tpu.matmul %90, %88, %cst_68 {dimension_numbers = #tpu.dot_dimension_numbers<[1], [0], [0], [1], [0, 0, 1, 1], [], []>} : vector<16x16xf32>, vector<16x256xf32>, vector<16x256xf32> -> vector<16x256xf32>
    %92 = arith.addf %87, %91 : vector<16x256xf32>
    %cst_69 = arith.constant 0.000000e+00 : f32
    %93 = vector.broadcast %cst_69 : f32 to vector<16x256xf32>
    %94 = arith.maximumf %92, %93 : vector<16x256xf32>
    %c0_70 = arith.constant 0 : index
    %c0_71 = arith.constant 0 : index
    %c0_72 = arith.constant 0 : index
    %95 = vector.load %arg12[%c0_70, %c0_71, %c0_72] : memref<1x16x256xf32, #tpu.memory_space<vmem>>, vector<1x16x256xf32>
    %96 = vector.shape_cast %95 : vector<1x16x256xf32> to vector<16x256xf32>
    %97 = vector.shape_cast %94 : vector<16x256xf32> to vector<1x16x256xf32>
    tpu.vector_store %arg12[%c0_70, %c0_71, %c0_72], %97 {strides = array<i32>} : memref<1x16x256xf32, #tpu.memory_space<vmem>>, vector<1x16x256xf32>,
    return
  }
  func.func @transform_0(%arg0: i32) -> (i32, i32, i32) {
    %c0_i32 = arith.constant 0 : i32
    %c0_i32_0 = arith.constant 0 : i32
    %c0_i32_1 = arith.constant 0 : i32
    return %arg0, %c0_i32, %c0_i32_0 : i32, i32, i32
  }
  func.func @transform_1(%arg0: i32) -> (i32, i32, i32) {
    %c0_i32 = arith.constant 0 : i32
    %c0_i32_0 = arith.constant 0 : i32
    %c0_i32_1 = arith.constant 0 : i32
    return %arg0, %c0_i32, %c0_i32_0 : i32, i32, i32
  }
  func.func @transform_2(%arg0: i32) -> (i32, i32) {
    %c0_i32 = arith.constant 0 : i32
    %c0_i32_0 = arith.constant 0 : i32
    %c0_i32_1 = arith.constant 0 : i32
    return %c0_i32, %c0_i32_0 : i32, i32
  }
  func.func @transform_3(%arg0: i32) -> (i32, i32) {
    %c0_i32 = arith.constant 0 : i32
    %c0_i32_0 = arith.constant 0 : i32
    %c0_i32_1 = arith.constant 0 : i32
    return %c0_i32, %c0_i32_0 : i32, i32
  }
  func.func @transform_4(%arg0: i32) -> (i32, i32, i32) {
    %c0_i32 = arith.constant 0 : i32
    %c0_i32_0 = arith.constant 0 : i32
    %c0_i32_1 = arith.constant 0 : i32
    %c0_i32_2 = arith.constant 0 : i32
    return %c0_i32, %c0_i32_0, %c0_i32_1 : i32, i32, i32
  }
  func.func @transform_5(%arg0: i32) -> (i32, i32) {
    %c0_i32 = arith.constant 0 : i32
    %c0_i32_0 = arith.constant 0 : i32
    %c0_i32_1 = arith.constant 0 : i32
    return %c0_i32, %c0_i32_0 : i32, i32
  }
  func.func @transform_6(%arg0: i32) -> (i32, i32) {
    %c0_i32 = arith.constant 0 : i32
    %c0_i32_0 = arith.constant 0 : i32
    %c0_i32_1 = arith.constant 0 : i32
    return %c0_i32, %c0_i32_0 : i32, i32
  }
  func.func @transform_7(%arg0: i32) -> (i32, i32) {
    %c0_i32 = arith.constant 0 : i32
    %c0_i32_0 = arith.constant 0 : i32
    %c0_i32_1 = arith.constant 0 : i32
    return %c0_i32, %c0_i32_0 : i32, i32
  }
  func.func @transform_8(%arg0: i32) -> (i32, i32) {
    %c0_i32 = arith.constant 0 : i32
    %c0_i32_0 = arith.constant 0 : i32
    %c0_i32_1 = arith.constant 0 : i32
    return %c0_i32, %c0_i32_0 : i32, i32
  }
  func.func @transform_9(%arg0: i32) -> (i32, i32) {
    %c0_i32 = arith.constant 0 : i32
    %c0_i32_0 = arith.constant 0 : i32
    %c0_i32_1 = arith.constant 0 : i32
    return %c0_i32, %c0_i32_0 : i32, i32
  }
  func.func @transform_10(%arg0: i32) -> (i32, i32) {
    %c0_i32 = arith.constant 0 : i32
    %c0_i32_0 = arith.constant 0 : i32
    %c0_i32_1 = arith.constant 0 : i32
    return %c0_i32, %c0_i32_0 : i32, i32
  }
  func.func @transform_11(%arg0: i32) -> (i32, i32, i32) {
    %c0_i32 = arith.constant 0 : i32
    %c0_i32_0 = arith.constant 0 : i32
    %c0_i32_1 = arith.constant 0 : i32
    return %arg0, %c0_i32, %c0_i32_0 : i32, i32, i32
  }
}

</mosaic_0001>

<llo_original>
// kernel: tcn_gcn_unit_forward.2
$region0: #{tcn_gcn_unit_forward.2}
  #allocation0 [shape = 'u32[]', space=smem, size = 0x4, offset = 0x4, fixed_abs, tag = 'smem constant byte address 0x4 - core index']
  #allocation1 [shape = 'u32[144,128]{1,0:T(1,128)}', space=vmem, size = 0x12000, scoped, tag = 'internal scratch']
  %s0 = inlined_call_operand.vmem [shape: f32[2,64,16], index: 0, kind: input, shape index: {}]
  %s1 = inlined_call_operand.vmem [shape: f32[3,16,16], index: 1, kind: input, shape index: {}]
  %s2 = inlined_call_operand.vmem [shape: f32[2,3,64,16], index: 2, kind: output, shape index: {}]
  %s3 = sld [smem:[#allocation0]]
  $region41: #{tcn_gcn_unit_forward.2} parent=0
    _
  %s5 = ssub.s32 1, %s3
  %s6 = scalar_select 0, %s5, %s3
  loop: start=0, step=1, limit=4
  $region2: #{tcn_gcn_unit_forward.2} parent=0 // loop_pre_header
    _
  $region3: #{tcn_gcn_unit_forward.2} parent=0 // loop_header
    %s8 = sphi 0, %s12
    %p9 = scmp.ge.s32.totalorder %s8, 4
    %s18 = sphi 0, %s20
    %s21 = sphi 0, %s18
    %s22 = sphi 0, %s21
    %s38 = sphi 0, %s22
    %s42 = sphi 0, %s42
    %s44 = sphi 0, %s42
    %s45 = sphi 0, %s44
    %s59 = sphi 0, %s45
    %s65 = sphi 0, %s67
    %s68 = sphi 0, %s65
    %s69 = sphi 0, %s68
    %s85 = sphi 0, %s69
  $region4: #{tcn_gcn_unit_forward.2} parent=0 // loop_header_branch
    %11 = sbr.rel (%p9) target = $region8
  $region5: #{tcn_gcn_unit_forward.2} parent=0 // loop_body
    %s13 = ssub.s32 %s8, 1
    %s14 = ssub.s32 %s8, 2
    %s15 = sadd.s32 %s8, 1
    %s16 = ssub.s32 %s8, %s15
    %p17 = scmp.eq.s32.totalorder %s16, 0
    %s19 = sadd.s32 %s18, 1
    %s20 = scalar_select %p17, %s18, %s19
    %p23 = pneg %p17
    %p24 = scmp.eq.s32.totalorder %s8, 1
    %p25 = por %p23, %p24
    %p26 = scmp.ne.s32.totalorder %s18, %s21
    %p27 = scmp.eq.s32.totalorder %s8, 0
    %p28 = por %p26, %p27
    %p29 = scmp.ne.s32.totalorder %s18, %s21
    %p30 = scmp.eq.s32.totalorder %s13, 1
    %p31 = por %p29, %p30
    %p32 = scmp.ne.s32.totalorder %s21, %s22
    %p33 = scmp.eq.s32.totalorder %s13, 0
    %p34 = por %p32, %p33
    %p35 = scmp.ne.s32.totalorder %s21, %s22
    %p36 = scmp.eq.s32.totalorder %s14, 1
    %p37 = por %p35, %p36
    %p39 = scmp.ne.s32.totalorder %s22, %s38
    %p40 = scmp.eq.s32.totalorder %s14, 0
    %p41 = por %p39, %p40
    %s43 = sadd.s32 %s42, 1
    %p46 = scmp.eq.s32.totalorder %s8, 1
    %p47 = scmp.ne.s32.totalorder %s42, %s44
    %p48 = scmp.eq.s32.totalorder %s8, 0
    %p49 = por %p47, %p48
    %p50 = scmp.ne.s32.totalorder %s42, %s44
    %p51 = scmp.eq.s32.totalorder %s13, 1
    %p52 = por %p50, %p51
    %p53 = scmp.ne.s32.totalorder %s44, %s45
    %p54 = scmp.eq.s32.totalorder %s13, 0
    %p55 = por %p53, %p54
    %p56 = scmp.ne.s32.totalorder %s44, %s45
    %p57 = scmp.eq.s32.totalorder %s14, 1
    %p58 = por %p56, %p57
    %p60 = scmp.ne.s32.totalorder %s45, %s59
    %p61 = scmp.eq.s32.totalorder %s14, 0
    %p62 = por %p60, %p61
    %s63 = ssub.s32 %s8, %s15
    %p64 = scmp.eq.s32.totalorder %s63, 0
    %s66 = sadd.s32 %s65, 1
    %s67 = scalar_select %p64, %s65, %s66
    %p70 = pneg %p64
    %p71 = scmp.eq.s32.totalorder %s8, 1
    %p72 = por %p70, %p71
    %p73 = scmp.ne.s32.totalorder %s65, %s68
    %p74 = scmp.eq.s32.totalorder %s8, 0
    %p75 = por %p73, %p74
    %p76 = scmp.ne.s32.totalorder %s65, %s68
    %p77 = scmp.eq.s32.totalorder %s13, 1
    %p78 = por %p76, %p77
    %p79 = scmp.ne.s32.totalorder %s68, %s69
    %p80 = scmp.eq.s32.totalorder %s13, 0
    %p81 = por %p79, %p80
    %p82 = scmp.ne.s32.totalorder %s68, %s69
    %p83 = scmp.eq.s32.totalorder %s14, 1
    %p84 = por %p82, %p83
    %p86 = scmp.ne.s32.totalorder %s69, %s85
    %p87 = scmp.eq.s32.totalorder %s14, 0
    %p88 = por %p86, %p87
    %p89 = scmp.le.s32.totalorder 1, %s8
    %p90 = scmp.lt.s32.totalorder %s8, 3
    %p91 = pnand %p89, %p90
    %p92 = pneg %p91
    // Predicated region
    $region9: #{tcn_gcn_unit_forward.2} parent=5 // pred_check
      _
    $region10: #{tcn_gcn_unit_forward.2} parent=5 // pred_check_branch
      %94 = sbr.rel (%p91) target = $region12
    $region11: #{tcn_gcn_unit_forward.2} parent=5 // pred_region
      %s95 = ssub.s32 %s8, 1
      // Predicated region
      $region13: #{tcn_gcn_unit_forward.2} parent=11 // pred_check
        %p96 = pneg %p55
      $region14: #{tcn_gcn_unit_forward.2} parent=11 // pred_check_branch
        %98 = sbr.rel (%p96) target = $region16
      $region15: #{tcn_gcn_unit_forward.2} parent=11 // pred_region
        _
      $region16: #{tcn_gcn_unit_forward.2} parent=11 // pred_fallthru
        _
    $region12: #{tcn_gcn_unit_forward.2} parent=5 // pred_fallthru
      _
    %p99 = scmp.lt.s32.totalorder %s8, 2
    // Predicated region
    $region17: #{tcn_gcn_unit_forward.2} parent=5 // pred_check
      %p100 = pneg %p99
    $region18: #{tcn_gcn_unit_forward.2} parent=5 // pred_check_branch
      %102 = sbr.rel (%p100) target = $region20
    $region19: #{tcn_gcn_unit_forward.2} parent=5 // pred_region
      // Predicated region
      $region21: #{tcn_gcn_unit_forward.2} parent=19 // pred_check
        %p103 = pneg %p28
      $region22: #{tcn_gcn_unit_forward.2} parent=19 // pred_check_branch
        %105 = sbr.rel (%p103) target = $region24
      $region23: #{tcn_gcn_unit_forward.2} parent=19 // pred_region
        %p106 = scmp.lt.s32.totalorder %s8, 1
        %s107 = scalar_select %p106, %s8, 1
        %s108 = smul.addr %s107, 8
        %s109 = smul.addr %s108, 8
        %s110 = scalar_lea.vmem %s0, %s109
      $region24: #{tcn_gcn_unit_forward.2} parent=19 // pred_fallthru
        _
    $region20: #{tcn_gcn_unit_forward.2} parent=5 // pred_fallthru
      _
    %p111 = scmp.le.s32.totalorder 1, %s8
    %p112 = scmp.lt.s32.totalorder %s8, 3
    %p113 = pnand %p111, %p112
    %p114 = pneg %p113
    // Predicated region
    $region25: #{tcn_gcn_unit_forward.2} parent=5 // pred_check
      _
    $region26: #{tcn_gcn_unit_forward.2} parent=5 // pred_check_branch
      %116 = sbr.rel (%p113) target = $region28
    $region27: #{tcn_gcn_unit_forward.2} parent=5 // pred_region
      %s117 = ssub.s32 %s8, 1
      %p118 = scmp.lt.s32.totalorder %s13, 1
      %s119 = scalar_select %p118, %s13, 1
      %s120 = smul.addr %s119, 8
      %s121 = smul.addr %s120, 8
      %s122 = scalar_lea.vmem %s0, %s121
      %p123 = pneg %p34
      %p124 = pneg %p31
      %p125 = pneg %p55
      %p126 = pneg %p52
      %p127 = pneg %p81
      %p128 = pneg %p78
      %p129 = scmp.lt.s32.totalorder %s13, 1
      %s130 = scalar_select %p129, %s13, 1
      %s131 = smul.addr %s130, 24
      %s132 = smul.addr %s131, 8
      %s133 = scalar_lea.vmem %s2, %s132
      %p134 = scmp.lt.s32.totalorder %s13, 1
      %s135 = scalar_select %p134, %s13, 1
      %s136 = smul.addr %s135, 8
      %s137 = smul.addr %s136, 8
      %s138 = scalar_lea.vmem %s0, %s137
      %p139 = scmp.lt.s32.totalorder %s13, 1
      %s140 = scalar_select %p139, %s13, 1
      %s141 = smul.addr %s140, 24
      %s142 = smul.addr %s141, 8
      %s143 = scalar_lea.vmem %s2, %s142
      %v144 = vld [vmem:[%s138] sm:$0xff]
      %v145 = vld [vmem:[%s138 + $0x8] sm:$0xff]
      %v146 = vld [vmem:[%s138 + $0x10] sm:$0xff]
      %v147 = vld [vmem:[%s138 + $0x18] sm:$0xff]
      %v148 = vld [vmem:[%s138 + $0x20] sm:$0xff]
      %v149 = vld [vmem:[%s138 + $0x28] sm:$0xff]
      %v150 = vld [vmem:[%s138 + $0x30] sm:$0xff]
      %v151 = vld [vmem:[%s138 + $0x38] sm:$0xff]
      %v152 = vld [vmem:[%s1] sm:$0xff]
      %v153 = vld [vmem:[%s1 + $0x8] sm:$0xff]
      %vm154 = vcmask 130048
      %v156 = vsel %vm154, %v144, 0
      %v159 = vsel %vm154, %v145, 0
      %v162 = vsel %vm154, %v146, 0
      %v165 = vsel %vm154, %v147, 0
      %v168 = vsel %vm154, %v148, 0
      %v171 = vsel %vm154, %v149, 0
      %v174 = vsel %vm154, %v150, 0
      %v177 = vsel %vm154, %v151, 0
      %179 = vmatprep.subr.mxu0 0.0
      %180 = vmatpush1.msra.mxu0 0.0
      %181 = vmatprep.subr.mxu0 0.0
      %182 = vmatpush1.msra.mxu0 0.0
      %183 = vmatprep.subr.mxu0 0.0
      %184 = vmatpush1.msra.mxu0 0.0
      %185 = vmatprep.subr.mxu0 0.0
      %186 = vmatpush1.msra.mxu0 0.0
      %187 = vmatprep.subr.mxu0 0.0
      %188 = vmatpush1.msra.mxu0 0.0
      %189 = vmatprep.subr.mxu0 0.0
      %190 = vmatpush1.msra.mxu0 0.0
      %191 = vmatprep.subr.mxu0 0.0
      %192 = vmatpush1.msra.mxu0 0.0
      %193 = vmatprep.subr.mxu0 0.0
      %194 = vmatpush1.msra.mxu0 0.0
      %195 = vmatprep.subr.mxu0 0.0
      %196 = vmatpush1.msra.mxu0 0.0
      %197 = vmatprep.subr.mxu0 0.0
      %198 = vmatpush1.msra.mxu0 0.0
      %199 = vmatprep.subr.mxu0 0.0
      %200 = vmatpush1.msra.mxu0 0.0
      %201 = vmatprep.subr.mxu0 0.0
      %202 = vmatpush1.msra.mxu0 0.0
      %203 = vmatprep.subr.mxu0 0.0
      %204 = vmatpush1.msra.mxu0 0.0
      %205 = vmatprep.subr.mxu0 0.0
      %206 = vmatpush1.msra.mxu0 0.0
      %207 = vmatprep.subr.mxu0 0.0
      %208 = vmatpush1.msra.mxu0 %v153
      %209 = vmatprep.subr.mxu0 0.0
      %210 = vmatpush1.msra.mxu0 %v152
      %211 = vmatprep.subr.mxu0 0.0
      %212 = vmatpush2.msra.mxu0 0.0
      %213 = vmatprep.subr.mxu0 0.0
      %214 = vmatpush2.msra.mxu0 0.0
      %215 = vmatprep.subr.mxu0 0.0
      %216 = vmatpush2.msra.mxu0 0.0
      %217 = vmatprep.subr.mxu0 0.0
      %218 = vmatpush2.msra.mxu0 0.0
      %219 = vmatprep.subr.mxu0 0.0
      %220 = vmatpush2.msra.mxu0 0.0
      %221 = vmatprep.subr.mxu0 0.0
      %222 = vmatpush2.msra.mxu0 0.0
      %223 = vmatprep.subr.mxu0 0.0
      %224 = vmatpush2.msra.mxu0 0.0
      %225 = vmatprep.subr.mxu0 0.0
      %226 = vmatpush2.msra.mxu0 0.0
      %227 = vmatprep.subr.mxu0 0.0
      %228 = vmatpush2.msra.mxu0 0.0
      %229 = vmatprep.subr.mxu0 0.0
      %230 = vmatpush2.msra.mxu0 0.0
      %231 = vmatprep.subr.mxu0 0.0
      %232 = vmatpush2.msra.mxu0 0.0
      %233 = vmatprep.subr.mxu0 0.0
      %234 = vmatpush2.msra.mxu0 0.0
      %235 = vmatprep.subr.mxu0 0.0
      %236 = vmatpush2.msra.mxu0 0.0
      %237 = vmatprep.subr.mxu0 0.0
      %238 = vmatpush2.msra.mxu0 0.0
      %239 = vmatprep.subr.mxu0 0.0
      %240 = vmatpush2.msra.mxu0 0.0
      %241 = vmatprep.subr.mxu0 0.0
      %242 = vmatpush2.msra.mxu0 0.0
      %243 = vmatprep.mubr.f32.mxu0 0.0
      %244 = vmatmul.mubr.f32.gmra.mxu0 %v156
      %v245 = vpop.f32.mrf.mxu0
      %v246 = vadd.f32 0.0, %v245
      %v247 = vpop.f32.mrf.mxu0
      %248 = vmatprep.mubr.f32.mxu0 0.0
      %249 = vmatmul.mubr.f32.gmra.mxu0 %v159
      %v250 = vpop.f32.mrf.mxu0
      %v251 = vadd.f32 0.0, %v250
      %v252 = vpop.f32.mrf.mxu0
      %253 = vmatprep.mubr.f32.mxu0 0.0
      %254 = vmatmul.mubr.f32.gmra.mxu0 %v162
      %v255 = vpop.f32.mrf.mxu0
      %v256 = vadd.f32 0.0, %v255
      %v257 = vpop.f32.mrf.mxu0
      %258 = vmatprep.mubr.f32.mxu0 0.0
      %259 = vmatmul.mubr.f32.gmra.mxu0 %v165
      %v260 = vpop.f32.mrf.mxu0
      %v261 = vadd.f32 0.0, %v260
      %v262 = vpop.f32.mrf.mxu0
      %263 = vmatprep.mubr.f32.mxu0 0.0
      %264 = vmatmul.mubr.f32.gmra.mxu0 %v168
      %v265 = vpop.f32.mrf.mxu0
      %v266 = vadd.f32 0.0, %v265
      %v267 = vpop.f32.mrf.mxu0
      %268 = vmatprep.mubr.f32.mxu0 0.0
      %269 = vmatmul.mubr.f32.gmra.mxu0 %v171
      %v270 = vpop.f32.mrf.mxu0
      %v271 = vadd.f32 0.0, %v270
      %v272 = vpop.f32.mrf.mxu0
      %273 = vmatprep.mubr.f32.mxu0 0.0
      %274 = vmatmul.mubr.f32.gmra.mxu0 %v174
      %v275 = vpop.f32.mrf.mxu0
      %v276 = vadd.f32 0.0, %v275
      %v277 = vpop.f32.mrf.mxu0
      %278 = vmatprep.mubr.f32.mxu0 0.0
      %279 = vmatmul.mubr.f32.gmra.mxu0 %v177
      %v280 = vpop.f32.mrf.mxu0
      %v281 = vadd.f32 0.0, %v280
      %v282 = vpop.f32.mrf.mxu0
      %283 = vdwg.mxu0
      %284 = vst.msk [vmem:[%s143] sm:$0xff] %vm154, %v246
      %285 = vst.msk [vmem:[%s143 + $0x8] sm:$0xff] %vm154, %v251
      %286 = vst.msk [vmem:[%s143 + $0x10] sm:$0xff] %vm154, %v256
      %287 = vst.msk [vmem:[%s143 + $0x18] sm:$0xff] %vm154, %v261
      %288 = vst.msk [vmem:[%s143 + $0x20] sm:$0xff] %vm154, %v266
      %289 = vst.msk [vmem:[%s143 + $0x28] sm:$0xff] %vm154, %v271
      %290 = vst.msk [vmem:[%s143 + $0x30] sm:$0xff] %vm154, %v276
      %291 = vst.msk [vmem:[%s143 + $0x38] sm:$0xff] %vm154, %v281
      %s292 = scalar_lea.vmem %s1, 16
      %v293 = vld [vmem:[%s292] sm:$0xff]
      %v294 = vld [vmem:[%s292 + $0x8] sm:$0xff]
      %295 = vmatprep.subr.mxu0 0.0
      %296 = vmatpush1.msra.mxu0 0.0
      %297 = vmatprep.subr.mxu0 0.0
      %298 = vmatpush1.msra.mxu0 0.0
      %299 = vmatprep.subr.mxu0 0.0
      %300 = vmatpush1.msra.mxu0 0.0
      %301 = vmatprep.subr.mxu0 0.0
      %302 = vmatpush1.msra.mxu0 0.0
      %303 = vmatprep.subr.mxu0 0.0
      %304 = vmatpush1.msra.mxu0 0.0
      %305 = vmatprep.subr.mxu0 0.0
      %306 = vmatpush1.msra.mxu0 0.0
      %307 = vmatprep.subr.mxu0 0.0
      %308 = vmatpush1.msra.mxu0 0.0
      %309 = vmatprep.subr.mxu0 0.0
      %310 = vmatpush1.msra.mxu0 0.0
      %311 = vmatprep.subr.mxu0 0.0
      %312 = vmatpush1.msra.mxu0 0.0
      %313 = vmatprep.subr.mxu0 0.0
      %314 = vmatpush1.msra.mxu0 0.0
      %315 = vmatprep.subr.mxu0 0.0
      %316 = vmatpush1.msra.mxu0 0.0
      %317 = vmatprep.subr.mxu0 0.0
      %318 = vmatpush1.msra.mxu0 0.0
      %319 = vmatprep.subr.mxu0 0.0
      %320 = vmatpush1.msra.mxu0 0.0
      %321 = vmatprep.subr.mxu0 0.0
      %322 = vmatpush1.msra.mxu0 0.0
      %323 = vmatprep.subr.mxu0 0.0
      %324 = vmatpush1.msra.mxu0 %v294
      %325 = vmatprep.subr.mxu0 0.0
      %326 = vmatpush1.msra.mxu0 %v293
      %327 = vmatprep.subr.mxu0 0.0
      %328 = vmatpush2.msra.mxu0 0.0
      %329 = vmatprep.subr.mxu0 0.0
      %330 = vmatpush2.msra.mxu0 0.0
      %331 = vmatprep.subr.mxu0 0.0
      %332 = vmatpush2.msra.mxu0 0.0
      %333 = vmatprep.subr.mxu0 0.0
      %334 = vmatpush2.msra.mxu0 0.0
      %335 = vmatprep.subr.mxu0 0.0
      %336 = vmatpush2.msra.mxu0 0.0
      %337 = vmatprep.subr.mxu0 0.0
      %338 = vmatpush2.msra.mxu0 0.0
      %339 = vmatprep.subr.mxu0 0.0
      %340 = vmatpush2.msra.mxu0 0.0
      %341 = vmatprep.subr.mxu0 0.0
      %342 = vmatpush2.msra.mxu0 0.0
      %343 = vmatprep.subr.mxu0 0.0
      %344 = vmatpush2.msra.mxu0 0.0
      %345 = vmatprep.subr.mxu0 0.0
      %346 = vmatpush2.msra.mxu0 0.0
      %347 = vmatprep.subr.mxu0 0.0
      %348 = vmatpush2.msra.mxu0 0.0
      %349 = vmatprep.subr.mxu0 0.0
      %350 = vmatpush2.msra.mxu0 0.0
      %351 = vmatprep.subr.mxu0 0.0
      %352 = vmatpush2.msra.mxu0 0.0
      %353 = vmatprep.subr.mxu0 0.0
      %354 = vmatpush2.msra.mxu0 0.0
      %355 = vmatprep.subr.mxu0 0.0
      %356 = vmatpush2.msra.mxu0 0.0
      %357 = vmatprep.subr.mxu0 0.0
      %358 = vmatpush2.msra.mxu0 0.0
      %359 = vmatprep.mubr.f32.mxu0 0.0
      %360 = vmatmul.mubr.f32.gmra.mxu0 %v156
      %v361 = vpop.f32.mrf.mxu0
      %v362 = vadd.f32 0.0, %v361
      %v363 = vpop.f32.mrf.mxu0
      %364 = vmatprep.mubr.f32.mxu0 0.0
      %365 = vmatmul.mubr.f32.gmra.mxu0 %v159
      %v366 = vpop.f32.mrf.mxu0
      %v367 = vadd.f32 0.0, %v366
      %v368 = vpop.f32.mrf.mxu0
      %369 = vmatprep.mubr.f32.mxu0 0.0
      %370 = vmatmul.mubr.f32.gmra.mxu0 %v162
      %v371 = vpop.f32.mrf.mxu0
      %v372 = vadd.f32 0.0, %v371
      %v373 = vpop.f32.mrf.mxu0
      %374 = vmatprep.mubr.f32.mxu0 0.0
      %375 = vmatmul.mubr.f32.gmra.mxu0 %v165
      %v376 = vpop.f32.mrf.mxu0
      %v377 = vadd.f32 0.0, %v376
      %v378 = vpop.f32.mrf.mxu0
      %379 = vmatprep.mubr.f32.mxu0 0.0
      %380 = vmatmul.mubr.f32.gmra.mxu0 %v168
      %v381 = vpop.f32.mrf.mxu0
      %v382 = vadd.f32 0.0, %v381
      %v383 = vpop.f32.mrf.mxu0
      %384 = vmatprep.mubr.f32.mxu0 0.0
      %385 = vmatmul.mubr.f32.gmra.mxu0 %v171
      %v386 = vpop.f32.mrf.mxu0
      %v387 = vadd.f32 0.0, %v386
      %v388 = vpop.f32.mrf.mxu0
      %389 = vmatprep.mubr.f32.mxu0 0.0
      %390 = vmatmul.mubr.f32.gmra.mxu0 %v174
      %v391 = vpop.f32.mrf.mxu0
      %v392 = vadd.f32 0.0, %v391
      %v393 = vpop.f32.mrf.mxu0
      %394 = vmatprep.mubr.f32.mxu0 0.0
      %395 = vmatmul.mubr.f32.gmra.mxu0 %v177
      %v396 = vpop.f32.mrf.mxu0
      %v397 = vadd.f32 0.0, %v396
      %v398 = vpop.f32.mrf.mxu0
      %399 = vdwg.mxu0
      %s400 = scalar_lea.vmem %s143, 64
      %401 = vst.msk [vmem:[%s400] sm:$0xff] %vm154, %v362
      %402 = vst.msk [vmem:[%s400 + $0x8] sm:$0xff] %vm154, %v367
      %403 = vst.msk [vmem:[%s400 + $0x10] sm:$0xff] %vm154, %v372
      %404 = vst.msk [vmem:[%s400 + $0x18] sm:$0xff] %vm154, %v377
      %405 = vst.msk [vmem:[%s400 + $0x20] sm:$0xff] %vm154, %v382
      %406 = vst.msk [vmem:[%s400 + $0x28] sm:$0xff] %vm154, %v387
      %407 = vst.msk [vmem:[%s400 + $0x30] sm:$0xff] %vm154, %v392
      %408 = vst.msk [vmem:[%s400 + $0x38] sm:$0xff] %vm154, %v397
      %s409 = scalar_lea.vmem %s1, 32
      %v410 = vld [vmem:[%s409] sm:$0xff]
      %v411 = vld [vmem:[%s409 + $0x8] sm:$0xff]
      %412 = vmatprep.subr.mxu0 0.0
      %413 = vmatpush1.msra.mxu0 0.0
      %414 = vmatprep.subr.mxu0 0.0
      %415 = vmatpush1.msra.mxu0 0.0
      %416 = vmatprep.subr.mxu0 0.0
      %417 = vmatpush1.msra.mxu0 0.0
      %418 = vmatprep.subr.mxu0 0.0
      %419 = vmatpush1.msra.mxu0 0.0
      %420 = vmatprep.subr.mxu0 0.0
      %421 = vmatpush1.msra.mxu0 0.0
      %422 = vmatprep.subr.mxu0 0.0
      %423 = vmatpush1.msra.mxu0 0.0
      %424 = vmatprep.subr.mxu0 0.0
      %425 = vmatpush1.msra.mxu0 0.0
      %426 = vmatprep.subr.mxu0 0.0
      %427 = vmatpush1.msra.mxu0 0.0
      %428 = vmatprep.subr.mxu0 0.0
      %429 = vmatpush1.msra.mxu0 0.0
      %430 = vmatprep.subr.mxu0 0.0
      %431 = vmatpush1.msra.mxu0 0.0
      %432 = vmatprep.subr.mxu0 0.0
      %433 = vmatpush1.msra.mxu0 0.0
      %434 = vmatprep.subr.mxu0 0.0
      %435 = vmatpush1.msra.mxu0 0.0
      %436 = vmatprep.subr.mxu0 0.0
      %437 = vmatpush1.msra.mxu0 0.0
      %438 = vmatprep.subr.mxu0 0.0
      %439 = vmatpush1.msra.mxu0 0.0
      %440 = vmatprep.subr.mxu0 0.0
      %441 = vmatpush1.msra.mxu0 %v411
      %442 = vmatprep.subr.mxu0 0.0
      %443 = vmatpush1.msra.mxu0 %v410
      %444 = vmatprep.subr.mxu0 0.0
      %445 = vmatpush2.msra.mxu0 0.0
      %446 = vmatprep.subr.mxu0 0.0
      %447 = vmatpush2.msra.mxu0 0.0
      %448 = vmatprep.subr.mxu0 0.0
      %449 = vmatpush2.msra.mxu0 0.0
      %450 = vmatprep.subr.mxu0 0.0
      %451 = vmatpush2.msra.mxu0 0.0
      %452 = vmatprep.subr.mxu0 0.0
      %453 = vmatpush2.msra.mxu0 0.0
      %454 = vmatprep.subr.mxu0 0.0
      %455 = vmatpush2.msra.mxu0 0.0
      %456 = vmatprep.subr.mxu0 0.0
      %457 = vmatpush2.msra.mxu0 0.0
      %458 = vmatprep.subr.mxu0 0.0
      %459 = vmatpush2.msra.mxu0 0.0
      %460 = vmatprep.subr.mxu0 0.0
      %461 = vmatpush2.msra.mxu0 0.0
      %462 = vmatprep.subr.mxu0 0.0
      %463 = vmatpush2.msra.mxu0 0.0
      %464 = vmatprep.subr.mxu0 0.0
      %465 = vmatpush2.msra.mxu0 0.0
      %466 = vmatprep.subr.mxu0 0.0
      %467 = vmatpush2.msra.mxu0 0.0
      %468 = vmatprep.subr.mxu0 0.0
      %469 = vmatpush2.msra.mxu0 0.0
      %470 = vmatprep.subr.mxu0 0.0
      %471 = vmatpush2.msra.mxu0 0.0
      %472 = vmatprep.subr.mxu0 0.0
      %473 = vmatpush2.msra.mxu0 0.0
      %474 = vmatprep.subr.mxu0 0.0
      %475 = vmatpush2.msra.mxu0 0.0
      %476 = vmatprep.mubr.f32.mxu0 0.0
      %477 = vmatmul.mubr.f32.gmra.mxu0 %v156
      %v478 = vpop.f32.mrf.mxu0
      %v479 = vadd.f32 0.0, %v478
      %v480 = vpop.f32.mrf.mxu0
      %481 = vmatprep.mubr.f32.mxu0 0.0
      %482 = vmatmul.mubr.f32.gmra.mxu0 %v159
      %v483 = vpop.f32.mrf.mxu0
      %v484 = vadd.f32 0.0, %v483
      %v485 = vpop.f32.mrf.mxu0
      %486 = vmatprep.mubr.f32.mxu0 0.0
      %487 = vmatmul.mubr.f32.gmra.mxu0 %v162
      %v488 = vpop.f32.mrf.mxu0
      %v489 = vadd.f32 0.0, %v488
      %v490 = vpop.f32.mrf.mxu0
      %491 = vmatprep.mubr.f32.mxu0 0.0
      %492 = vmatmul.mubr.f32.gmra.mxu0 %v165
      %v493 = vpop.f32.mrf.mxu0
      %v494 = vadd.f32 0.0, %v493
      %v495 = vpop.f32.mrf.mxu0
      %496 = vmatprep.mubr.f32.mxu0 0.0
      %497 = vmatmul.mubr.f32.gmra.mxu0 %v168
      %v498 = vpop.f32.mrf.mxu0
      %v499 = vadd.f32 0.0, %v498
      %v500 = vpop.f32.mrf.mxu0
      %501 = vmatprep.mubr.f32.mxu0 0.0
      %502 = vmatmul.mubr.f32.gmra.mxu0 %v171
      %v503 = vpop.f32.mrf.mxu0
      %v504 = vadd.f32 0.0, %v503
      %v505 = vpop.f32.mrf.mxu0
      %506 = vmatprep.mubr.f32.mxu0 0.0
      %507 = vmatmul.mubr.f32.gmra.mxu0 %v174
      %v508 = vpop.f32.mrf.mxu0
      %v509 = vadd.f32 0.0, %v508
      %v510 = vpop.f32.mrf.mxu0
      %511 = vmatprep.mubr.f32.mxu0 0.0
      %512 = vmatmul.mubr.f32.gmra.mxu0 %v177
      %v513 = vpop.f32.mrf.mxu0
      %v514 = vadd.f32 0.0, %v513
      %v515 = vpop.f32.mrf.mxu0
      %516 = vdwg.mxu0
      %s517 = scalar_lea.vmem %s143, 128
      %518 = vst.msk [vmem:[%s517] sm:$0xff] %vm154, %v479
      %519 = vst.msk [vmem:[%s517 + $0x8] sm:$0xff] %vm154, %v484
      %520 = vst.msk [vmem:[%s517 + $0x10] sm:$0xff] %vm154, %v489
      %521 = vst.msk [vmem:[%s517 + $0x18] sm:$0xff] %vm154, %v494
      %522 = vst.msk [vmem:[%s517 + $0x20] sm:$0xff] %vm154, %v499
      %523 = vst.msk [vmem:[%s517 + $0x28] sm:$0xff] %vm154, %v504
      %524 = vst.msk [vmem:[%s517 + $0x30] sm:$0xff] %vm154, %v509
      %525 = vst.msk [vmem:[%s517 + $0x38] sm:$0xff] %vm154, %v514
      %p526 = scmp.lt.s32.totalorder %s13, 1
      %s527 = scalar_select %p526, %s13, 1
      %s528 = smul.addr %s527, 24
      %s529 = smul.addr %s528, 8
      %s530 = scalar_lea.vmem %s2, %s529
      // Predicated region
      $region29: #{tcn_gcn_unit_forward.2} parent=27 // pred_check
        %p531 = pneg %p78
      $region30: #{tcn_gcn_unit_forward.2} parent=27 // pred_check_branch
        %533 = sbr.rel (%p531) target = $region32
      $region31: #{tcn_gcn_unit_forward.2} parent=27 // pred_region
        _
      $region32: #{tcn_gcn_unit_forward.2} parent=27 // pred_fallthru
        _
    $region28: #{tcn_gcn_unit_forward.2} parent=5 // pred_fallthru
      _
    %p534 = scmp.le.s32.totalorder 2, %s8
    // Predicated region
    $region33: #{tcn_gcn_unit_forward.2} parent=5 // pred_check
      %p535 = pneg %p534
    $region34: #{tcn_gcn_unit_forward.2} parent=5 // pred_check_branch
      %537 = sbr.rel (%p535) target = $region36
    $region35: #{tcn_gcn_unit_forward.2} parent=5 // pred_region
      %s538 = ssub.s32 %s8, 2
      // Predicated region
      $region37: #{tcn_gcn_unit_forward.2} parent=35 // pred_check
        %p539 = pneg %p84
      $region38: #{tcn_gcn_unit_forward.2} parent=35 // pred_check_branch
        %541 = sbr.rel (%p539) target = $region40
      $region39: #{tcn_gcn_unit_forward.2} parent=35 // pred_region
        %p542 = scmp.lt.s32.totalorder %s14, 1
        %s543 = scalar_select %p542, %s14, 1
        %s544 = smul.addr %s543, 24
        %s545 = smul.addr %s544, 8
        %s546 = scalar_lea.vmem %s2, %s545
      $region40: #{tcn_gcn_unit_forward.2} parent=35 // pred_fallthru
        _
    $region36: #{tcn_gcn_unit_forward.2} parent=5 // pred_fallthru
      _
  $region6: #{tcn_gcn_unit_forward.2} parent=0 // loop_footer
    %s12 = sadd.s32 1, %s8
  $region7: #{tcn_gcn_unit_forward.2} parent=0 // loop_footer_branch
    %7 = sbr.rel target = $region3
  $region8: #{tcn_gcn_unit_forward.2} parent=0 // loop_exit
    _

// kernel: tcn_gcn_unit_forward.3
$region0: #{tcn_gcn_unit_forward.3}
  #allocation0 [shape = 'u32[]', space=smem, size = 0x4, offset = 0x4, fixed_abs, tag = 'smem constant byte address 0x4 - core index']
  #allocation1 [shape = 'u32[144,128]{1,0:T(1,128)}', space=vmem, size = 0x12000, scoped, tag = 'internal scratch']
  #allocation2 [shape = 'f32[16,320]{1,0:T(8,128)}', space=vmem, size = 0x6000, scoped, tag = 'scratch operand']
  %s0 = inlined_call_operand.vmem [shape: f32[2,12,256], index: 0, kind: input, shape index: {}]
  %s1 = inlined_call_operand.vmem [shape: f32[2,4,256], index: 1, kind: input, shape index: {}]
  %s2 = inlined_call_operand.vmem [shape: f32[16,12], index: 2, kind: input, shape index: {}]
  %s3 = inlined_call_operand.vmem [shape: f32[16,4], index: 3, kind: input, shape index: {}]
  %s4 = inlined_call_operand.vmem [shape: f32[5,16,16], index: 4, kind: input, shape index: {}]
  %s5 = inlined_call_operand.vmem [shape: f32[16,4], index: 5, kind: input, shape index: {}]
  %s6 = inlined_call_operand.vmem [shape: f32[16,16], index: 6, kind: input, shape index: {}]
  %s7 = inlined_call_operand.vmem [shape: f32[16,16], index: 7, kind: input, shape index: {}]
  %s8 = inlined_call_operand.vmem [shape: f32[16,4], index: 8, kind: input, shape index: {}]
  %s9 = inlined_call_operand.vmem [shape: f32[16,256], index: 9, kind: input, shape index: {}]
  %s10 = inlined_call_operand.vmem [shape: f32[256,16], index: 10, kind: input, shape index: {}]
  %s11 = inlined_call_operand.vmem [shape: f32[2,16,256], index: 11, kind: output, shape index: {}]
  %s12 = sld [smem:[#allocation0]]
  $region77: #{tcn_gcn_unit_forward.3} parent=0
    _
  %s14 = ssub.s32 1, %s12
  %s15 = scalar_select 0, %s14, %s12
  loop: start=0, step=1, limit=4
  $region2: #{tcn_gcn_unit_forward.3} parent=0 // loop_pre_header
    _
  $region3: #{tcn_gcn_unit_forward.3} parent=0 // loop_header
    %s17 = sphi 0, %s21
    %p18 = scmp.ge.s32.totalorder %s17, 4
    %s27 = sphi 0, %s29
    %s30 = sphi 0, %s27
    %s31 = sphi 0, %s30
    %s47 = sphi 0, %s31
    %s53 = sphi 0, %s55
    %s56 = sphi 0, %s53
    %s57 = sphi 0, %s56
    %s73 = sphi 0, %s57
    %s77 = sphi 0, %s77
    %s79 = sphi 0, %s77
    %s80 = sphi 0, %s79
    %s94 = sphi 0, %s80
    %s98 = sphi 0, %s98
    %s100 = sphi 0, %s98
    %s101 = sphi 0, %s100
    %s115 = sphi 0, %s101
    %s119 = sphi 0, %s119
    %s121 = sphi 0, %s119
    %s122 = sphi 0, %s121
    %s136 = sphi 0, %s122
    %s140 = sphi 0, %s140
    %s142 = sphi 0, %s140
    %s143 = sphi 0, %s142
    %s157 = sphi 0, %s143
    %s161 = sphi 0, %s161
    %s163 = sphi 0, %s161
    %s164 = sphi 0, %s163
    %s178 = sphi 0, %s164
    %s182 = sphi 0, %s182
    %s184 = sphi 0, %s182
    %s185 = sphi 0, %s184
    %s199 = sphi 0, %s185
    %s203 = sphi 0, %s203
    %s205 = sphi 0, %s203
    %s206 = sphi 0, %s205
    %s220 = sphi 0, %s206
    %s224 = sphi 0, %s224
    %s226 = sphi 0, %s224
    %s227 = sphi 0, %s226
    %s241 = sphi 0, %s227
    %s245 = sphi 0, %s245
    %s247 = sphi 0, %s245
    %s248 = sphi 0, %s247
    %s262 = sphi 0, %s248
    %s268 = sphi 0, %s270
    %s271 = sphi 0, %s268
    %s272 = sphi 0, %s271
    %s288 = sphi 0, %s272
  $region4: #{tcn_gcn_unit_forward.3} parent=0 // loop_header_branch
    %20 = sbr.rel (%p18) target = $region8
  $region5: #{tcn_gcn_unit_forward.3} parent=0 // loop_body
    %s22 = ssub.s32 %s17, 1
    %s23 = ssub.s32 %s17, 2
    %s24 = sadd.s32 %s17, 1
    %s25 = ssub.s32 %s17, %s24
    %p26 = scmp.eq.s32.totalorder %s25, 0
    %s28 = sadd.s32 %s27, 1
    %s29 = scalar_select %p26, %s27, %s28
    %p32 = pneg %p26
    %p33 = scmp.eq.s32.totalorder %s17, 1
    %p34 = por %p32, %p33
    %p35 = scmp.ne.s32.totalorder %s27, %s30
    %p36 = scmp.eq.s32.totalorder %s17, 0
    %p37 = por %p35, %p36
    %p38 = scmp.ne.s32.totalorder %s27, %s30
    %p39 = scmp.eq.s32.totalorder %s22, 1
    %p40 = por %p38, %p39
    %p41 = scmp.ne.s32.totalorder %s30, %s31
    %p42 = scmp.eq.s32.totalorder %s22, 0
    %p43 = por %p41, %p42
    %p44 = scmp.ne.s32.totalorder %s30, %s31
    %p45 = scmp.eq.s32.totalorder %s23, 1
    %p46 = por %p44, %p45
    %p48 = scmp.ne.s32.totalorder %s31, %s47
    %p49 = scmp.eq.s32.totalorder %s23, 0
    %p50 = por %p48, %p49
    %s51 = ssub.s32 %s17, %s24
    %p52 = scmp.eq.s32.totalorder %s51, 0
    %s54 = sadd.s32 %s53, 1
    %s55 = scalar_select %p52, %s53, %s54
    %p58 = pneg %p52
    %p59 = scmp.eq.s32.totalorder %s17, 1
    %p60 = por %p58, %p59
    %p61 = scmp.ne.s32.totalorder %s53, %s56
    %p62 = scmp.eq.s32.totalorder %s17, 0
    %p63 = por %p61, %p62
    %p64 = scmp.ne.s32.totalorder %s53, %s56
    %p65 = scmp.eq.s32.totalorder %s22, 1
    %p66 = por %p64, %p65
    %p67 = scmp.ne.s32.totalorder %s56, %s57
    %p68 = scmp.eq.s32.totalorder %s22, 0
    %p69 = por %p67, %p68
    %p70 = scmp.ne.s32.totalorder %s56, %s57
    %p71 = scmp.eq.s32.totalorder %s23, 1
    %p72 = por %p70, %p71
    %p74 = scmp.ne.s32.totalorder %s57, %s73
    %p75 = scmp.eq.s32.totalorder %s23, 0
    %p76 = por %p74, %p75
    %s78 = sadd.s32 %s77, 1
    %p81 = scmp.eq.s32.totalorder %s17, 1
    %p82 = scmp.ne.s32.totalorder %s77, %s79
    %p83 = scmp.eq.s32.totalorder %s17, 0
    %p84 = por %p82, %p83
    %p85 = scmp.ne.s32.totalorder %s77, %s79
    %p86 = scmp.eq.s32.totalorder %s22, 1
    %p87 = por %p85, %p86
    %p88 = scmp.ne.s32.totalorder %s79, %s80
    %p89 = scmp.eq.s32.totalorder %s22, 0
    %p90 = por %p88, %p89
    %p91 = scmp.ne.s32.totalorder %s79, %s80
    %p92 = scmp.eq.s32.totalorder %s23, 1
    %p93 = por %p91, %p92
    %p95 = scmp.ne.s32.totalorder %s80, %s94
    %p96 = scmp.eq.s32.totalorder %s23, 0
    %p97 = por %p95, %p96
    %s99 = sadd.s32 %s98, 1
    %p102 = scmp.eq.s32.totalorder %s17, 1
    %p103 = scmp.ne.s32.totalorder %s98, %s100
    %p104 = scmp.eq.s32.totalorder %s17, 0
    %p105 = por %p103, %p104
    %p106 = scmp.ne.s32.totalorder %s98, %s100
    %p107 = scmp.eq.s32.totalorder %s22, 1
    %p108 = por %p106, %p107
    %p109 = scmp.ne.s32.totalorder %s100, %s101
    %p110 = scmp.eq.s32.totalorder %s22, 0
    %p111 = por %p109, %p110
    %p112 = scmp.ne.s32.totalorder %s100, %s101
    %p113 = scmp.eq.s32.totalorder %s23, 1
    %p114 = por %p112, %p113
    %p116 = scmp.ne.s32.totalorder %s101, %s115
    %p117 = scmp.eq.s32.totalorder %s23, 0
    %p118 = por %p116, %p117
    %s120 = sadd.s32 %s119, 1
    %p123 = scmp.eq.s32.totalorder %s17, 1
    %p124 = scmp.ne.s32.totalorder %s119, %s121
    %p125 = scmp.eq.s32.totalorder %s17, 0
    %p126 = por %p124, %p125
    %p127 = scmp.ne.s32.totalorder %s119, %s121
    %p128 = scmp.eq.s32.totalorder %s22, 1
    %p129 = por %p127, %p128
    %p130 = scmp.ne.s32.totalorder %s121, %s122
    %p131 = scmp.eq.s32.totalorder %s22, 0
    %p132 = por %p130, %p131
    %p133 = scmp.ne.s32.totalorder %s121, %s122
    %p134 = scmp.eq.s32.totalorder %s23, 1
    %p135 = por %p133, %p134
    %p137 = scmp.ne.s32.totalorder %s122, %s136
    %p138 = scmp.eq.s32.totalorder %s23, 0
    %p139 = por %p137, %p138
    %s141 = sadd.s32 %s140, 1
    %p144 = scmp.eq.s32.totalorder %s17, 1
    %p145 = scmp.ne.s32.totalorder %s140, %s142
    %p146 = scmp.eq.s32.totalorder %s17, 0
    %p147 = por %p145, %p146
    %p148 = scmp.ne.s32.totalorder %s140, %s142
    %p149 = scmp.eq.s32.totalorder %s22, 1
    %p150 = por %p148, %p149
    %p151 = scmp.ne.s32.totalorder %s142, %s143
    %p152 = scmp.eq.s32.totalorder %s22, 0
    %p153 = por %p151, %p152
    %p154 = scmp.ne.s32.totalorder %s142, %s143
    %p155 = scmp.eq.s32.totalorder %s23, 1
    %p156 = por %p154, %p155
    %p158 = scmp.ne.s32.totalorder %s143, %s157
    %p159 = scmp.eq.s32.totalorder %s23, 0
    %p160 = por %p158, %p159
    %s162 = sadd.s32 %s161, 1
    %p165 = scmp.eq.s32.totalorder %s17, 1
    %p166 = scmp.ne.s32.totalorder %s161, %s163
    %p167 = scmp.eq.s32.totalorder %s17, 0
    %p168 = por %p166, %p167
    %p169 = scmp.ne.s32.totalorder %s161, %s163
    %p170 = scmp.eq.s32.totalorder %s22, 1
    %p171 = por %p169, %p170
    %p172 = scmp.ne.s32.totalorder %s163, %s164
    %p173 = scmp.eq.s32.totalorder %s22, 0
    %p174 = por %p172, %p173
    %p175 = scmp.ne.s32.totalorder %s163, %s164
    %p176 = scmp.eq.s32.totalorder %s23, 1
    %p177 = por %p175, %p176
    %p179 = scmp.ne.s32.totalorder %s164, %s178
    %p180 = scmp.eq.s32.totalorder %s23, 0
    %p181 = por %p179, %p180
    %s183 = sadd.s32 %s182, 1
    %p186 = scmp.eq.s32.totalorder %s17, 1
    %p187 = scmp.ne.s32.totalorder %s182, %s184
    %p188 = scmp.eq.s32.totalorder %s17, 0
    %p189 = por %p187, %p188
    %p190 = scmp.ne.s32.totalorder %s182, %s184
    %p191 = scmp.eq.s32.totalorder %s22, 1
    %p192 = por %p190, %p191
    %p193 = scmp.ne.s32.totalorder %s184, %s185
    %p194 = scmp.eq.s32.totalorder %s22, 0
    %p195 = por %p193, %p194
    %p196 = scmp.ne.s32.totalorder %s184, %s185
    %p197 = scmp.eq.s32.totalorder %s23, 1
    %p198 = por %p196, %p197
    %p200 = scmp.ne.s32.totalorder %s185, %s199
    %p201 = scmp.eq.s32.totalorder %s23, 0
    %p202 = por %p200, %p201
    %s204 = sadd.s32 %s203, 1
    %p207 = scmp.eq.s32.totalorder %s17, 1
    %p208 = scmp.ne.s32.totalorder %s203, %s205
    %p209 = scmp.eq.s32.totalorder %s17, 0
    %p210 = por %p208, %p209
    %p211 = scmp.ne.s32.totalorder %s203, %s205
    %p212 = scmp.eq.s32.totalorder %s22, 1
    %p213 = por %p211, %p212
    %p214 = scmp.ne.s32.totalorder %s205, %s206
    %p215 = scmp.eq.s32.totalorder %s22, 0
    %p216 = por %p214, %p215
    %p217 = scmp.ne.s32.totalorder %s205, %s206
    %p218 = scmp.eq.s32.totalorder %s23, 1
    %p219 = por %p217, %p218
    %p221 = scmp.ne.s32.totalorder %s206, %s220
    %p222 = scmp.eq.s32.totalorder %s23, 0
    %p223 = por %p221, %p222
    %s225 = sadd.s32 %s224, 1
    %p228 = scmp.eq.s32.totalorder %s17, 1
    %p229 = scmp.ne.s32.totalorder %s224, %s226
    %p230 = scmp.eq.s32.totalorder %s17, 0
    %p231 = por %p229, %p230
    %p232 = scmp.ne.s32.totalorder %s224, %s226
    %p233 = scmp.eq.s32.totalorder %s22, 1
    %p234 = por %p232, %p233
    %p235 = scmp.ne.s32.totalorder %s226, %s227
    %p236 = scmp.eq.s32.totalorder %s22, 0
    %p237 = por %p235, %p236
    %p238 = scmp.ne.s32.totalorder %s226, %s227
    %p239 = scmp.eq.s32.totalorder %s23, 1
    %p240 = por %p238, %p239
    %p242 = scmp.ne.s32.totalorder %s227, %s241
    %p243 = scmp.eq.s32.totalorder %s23, 0
    %p244 = por %p242, %p243
    %s246 = sadd.s32 %s245, 1
    %p249 = scmp.eq.s32.totalorder %s17, 1
    %p250 = scmp.ne.s32.totalorder %s245, %s247
    %p251 = scmp.eq.s32.totalorder %s17, 0
    %p252 = por %p250, %p251
    %p253 = scmp.ne.s32.totalorder %s245, %s247
    %p254 = scmp.eq.s32.totalorder %s22, 1
    %p255 = por %p253, %p254
    %p256 = scmp.ne.s32.totalorder %s247, %s248
    %p257 = scmp.eq.s32.totalorder %s22, 0
    %p258 = por %p256, %p257
    %p259 = scmp.ne.s32.totalorder %s247, %s248
    %p260 = scmp.eq.s32.totalorder %s23, 1
    %p261 = por %p259, %p260
    %p263 = scmp.ne.s32.totalorder %s248, %s262
    %p264 = scmp.eq.s32.totalorder %s23, 0
    %p265 = por %p263, %p264
    %s266 = ssub.s32 %s17, %s24
    %p267 = scmp.eq.s32.totalorder %s266, 0
    %s269 = sadd.s32 %s268, 1
    %s270 = scalar_select %p267, %s268, %s269
    %p273 = pneg %p267
    %p274 = scmp.eq.s32.totalorder %s17, 1
    %p275 = por %p273, %p274
    %p276 = scmp.ne.s32.totalorder %s268, %s271
    %p277 = scmp.eq.s32.totalorder %s17, 0
    %p278 = por %p276, %p277
    %p279 = scmp.ne.s32.totalorder %s268, %s271
    %p280 = scmp.eq.s32.totalorder %s22, 1
    %p281 = por %p279, %p280
    %p282 = scmp.ne.s32.totalorder %s271, %s272
    %p283 = scmp.eq.s32.totalorder %s22, 0
    %p284 = por %p282, %p283
    %p285 = scmp.ne.s32.totalorder %s271, %s272
    %p286 = scmp.eq.s32.totalorder %s23, 1
    %p287 = por %p285, %p286
    %p289 = scmp.ne.s32.totalorder %s272, %s288
    %p290 = scmp.eq.s32.totalorder %s23, 0
    %p291 = por %p289, %p290
    %p292 = scmp.le.s32.totalorder 1, %s17
    %p293 = scmp.lt.s32.totalorder %s17, 3
    %p294 = pnand %p292, %p293
    %p295 = pneg %p294
    // Predicated region
    $region9: #{tcn_gcn_unit_forward.3} parent=5 // pred_check
      _
    $region10: #{tcn_gcn_unit_forward.3} parent=5 // pred_check_branch
      %297 = sbr.rel (%p294) target = $region12
    $region11: #{tcn_gcn_unit_forward.3} parent=5 // pred_region
      %s298 = ssub.s32 %s17, 1
      // Predicated region
      $region13: #{tcn_gcn_unit_forward.3} parent=11 // pred_check
        %p299 = pneg %p90
      $region14: #{tcn_gcn_unit_forward.3} parent=11 // pred_check_branch
        %301 = sbr.rel (%p299) target = $region16
      $region15: #{tcn_gcn_unit_forward.3} parent=11 // pred_region
        _
      $region16: #{tcn_gcn_unit_forward.3} parent=11 // pred_fallthru
        _
      // Predicated region
      $region17: #{tcn_gcn_unit_forward.3} parent=11 // pred_check
        %p302 = pneg %p111
      $region18: #{tcn_gcn_unit_forward.3} parent=11 // pred_check_branch
        %304 = sbr.rel (%p302) target = $region20
      $region19: #{tcn_gcn_unit_forward.3} parent=11 // pred_region
        _
      $region20: #{tcn_gcn_unit_forward.3} parent=11 // pred_fallthru
        _
      // Predicated region
      $region21: #{tcn_gcn_unit_forward.3} parent=11 // pred_check
        %p305 = pneg %p132
      $region22: #{tcn_gcn_unit_forward.3} parent=11 // pred_check_branch
        %307 = sbr.rel (%p305) target = $region24
      $region23: #{tcn_gcn_unit_forward.3} parent=11 // pred_region
        _
      $region24: #{tcn_gcn_unit_forward.3} parent=11 // pred_fallthru
        _
      // Predicated region
      $region25: #{tcn_gcn_unit_forward.3} parent=11 // pred_check
        %p308 = pneg %p153
      $region26: #{tcn_gcn_unit_forward.3} parent=11 // pred_check_branch
        %310 = sbr.rel (%p308) target = $region28
      $region27: #{tcn_gcn_unit_forward.3} parent=11 // pred_region
        _
      $region28: #{tcn_gcn_unit_forward.3} parent=11 // pred_fallthru
        _
      // Predicated region
      $region29: #{tcn_gcn_unit_forward.3} parent=11 // pred_check
        %p311 = pneg %p174
      $region30: #{tcn_gcn_unit_forward.3} parent=11 // pred_check_branch
        %313 = sbr.rel (%p311) target = $region32
      $region31: #{tcn_gcn_unit_forward.3} parent=11 // pred_region
        _
      $region32: #{tcn_gcn_unit_forward.3} parent=11 // pred_fallthru
        _
      // Predicated region
      $region33: #{tcn_gcn_unit_forward.3} parent=11 // pred_check
        %p314 = pneg %p195
      $region34: #{tcn_gcn_unit_forward.3} parent=11 // pred_check_branch
        %316 = sbr.rel (%p314) target = $region36
      $region35: #{tcn_gcn_unit_forward.3} parent=11 // pred_region
        _
      $region36: #{tcn_gcn_unit_forward.3} parent=11 // pred_fallthru
        _
      // Predicated region
      $region37: #{tcn_gcn_unit_forward.3} parent=11 // pred_check
        %p317 = pneg %p216
      $region38: #{tcn_gcn_unit_forward.3} parent=11 // pred_check_branch
        %319 = sbr.rel (%p317) target = $region40
      $region39: #{tcn_gcn_unit_forward.3} parent=11 // pred_region
        _
      $region40: #{tcn_gcn_unit_forward.3} parent=11 // pred_fallthru
        _
      // Predicated region
      $region41: #{tcn_gcn_unit_forward.3} parent=11 // pred_check
        %p320 = pneg %p237
      $region42: #{tcn_gcn_unit_forward.3} parent=11 // pred_check_branch
        %322 = sbr.rel (%p320) target = $region44
      $region43: #{tcn_gcn_unit_forward.3} parent=11 // pred_region
        _
      $region44: #{tcn_gcn_unit_forward.3} parent=11 // pred_fallthru
        _
      // Predicated region
      $region45: #{tcn_gcn_unit_forward.3} parent=11 // pred_check
        %p323 = pneg %p258
      $region46: #{tcn_gcn_unit_forward.3} parent=11 // pred_check_branch
        %325 = sbr.rel (%p323) target = $region48
      $region47: #{tcn_gcn_unit_forward.3} parent=11 // pred_region
        _
      $region48: #{tcn_gcn_unit_forward.3} parent=11 // pred_fallthru
        _
    $region12: #{tcn_gcn_unit_forward.3} parent=5 // pred_fallthru
      _
    %p326 = scmp.lt.s32.totalorder %s17, 2
    // Predicated region
    $region49: #{tcn_gcn_unit_forward.3} parent=5 // pred_check
      %p327 = pneg %p326
    $region50: #{tcn_gcn_unit_forward.3} parent=5 // pred_check_branch
      %329 = sbr.rel (%p327) target = $region52
    $region51: #{tcn_gcn_unit_forward.3} parent=5 // pred_region
      // Predicated region
      $region53: #{tcn_gcn_unit_forward.3} parent=51 // pred_check
        %p330 = pneg %p37
      $region54: #{tcn_gcn_unit_forward.3} parent=51 // pred_check_branch
        %332 = sbr.rel (%p330) target = $region56
      $region55: #{tcn_gcn_unit_forward.3} parent=51 // pred_region
        %p333 = scmp.lt.s32.totalorder %s17, 1
        %s334 = scalar_select %p333, %s17, 1
        %s335 = smul.addr %s334, 4
        %s336 = smul.addr %s335, 8
        %s337 = scalar_lea.vmem %s0, %s336
      $region56: #{tcn_gcn_unit_forward.3} parent=51 // pred_fallthru
        _
      // Predicated region
      $region57: #{tcn_gcn_unit_forward.3} parent=51 // pred_check
        %p338 = pneg %p63
      $region58: #{tcn_gcn_unit_forward.3} parent=51 // pred_check_branch
        %340 = sbr.rel (%p338) target = $region60
      $region59: #{tcn_gcn_unit_forward.3} parent=51 // pred_region
        %p341 = scmp.lt.s32.totalorder %s17, 1
        %s342 = scalar_select %p341, %s17, 1
        %s343 = smul.addr %s342, 2
        %s344 = smul.addr %s343, 4
        %s345 = scalar_lea.vmem %s1, %s344
      $region60: #{tcn_gcn_unit_forward.3} parent=51 // pred_fallthru
        _
    $region52: #{tcn_gcn_unit_forward.3} parent=5 // pred_fallthru
      _
    %p346 = scmp.le.s32.totalorder 1, %s17
    %p347 = scmp.lt.s32.totalorder %s17, 3
    %p348 = pnand %p346, %p347
    %p349 = pneg %p348
    // Predicated region
    $region61: #{tcn_gcn_unit_forward.3} parent=5 // pred_check
      _
    $region62: #{tcn_gcn_unit_forward.3} parent=5 // pred_check_branch
      %351 = sbr.rel (%p348) target = $region64
    $region63: #{tcn_gcn_unit_forward.3} parent=5 // pred_region
      %s352 = ssub.s32 %s17, 1
      %p353 = scmp.lt.s32.totalorder %s22, 1
      %s354 = scalar_select %p353, %s22, 1
      %s355 = smul.addr %s354, 4
      %s356 = smul.addr %s355, 8
      %s357 = scalar_lea.vmem %s0, %s356
      %p358 = pneg %p43
      %p359 = pneg %p40
      %p360 = scmp.lt.s32.totalorder %s22, 1
      %s361 = scalar_select %p360, %s22, 1
      %s362 = smul.addr %s361, 2
      %s363 = smul.addr %s362, 4
      %s364 = scalar_lea.vmem %s1, %s363
      %p365 = pneg %p69
      %p366 = pneg %p66
      %p367 = pneg %p90
      %p368 = pneg %p87
      %p369 = pneg %p111
      %p370 = pneg %p108
      %p371 = pneg %p132
      %p372 = pneg %p129
      %p373 = pneg %p153
      %p374 = pneg %p150
      %p375 = pneg %p174
      %p376 = pneg %p171
      %p377 = pneg %p195
      %p378 = pneg %p192
      %p379 = pneg %p216
      %p380 = pneg %p213
      %p381 = pneg %p237
      %p382 = pneg %p234
      %p383 = pneg %p258
      %p384 = pneg %p255
      %p385 = pneg %p284
      %p386 = pneg %p281
      %p387 = scmp.lt.s32.totalorder %s22, 1
      %s388 = scalar_select %p387, %s22, 1
      %s389 = smul.addr %s388, 4
      %s390 = smul.addr %s389, 8
      %s391 = scalar_lea.vmem %s11, %s390
      %p392 = scmp.lt.s32.totalorder %s22, 1
      %s393 = scalar_select %p392, %s22, 1
      %s394 = smul.addr %s393, 4
      %s395 = smul.addr %s394, 8
      %s396 = scalar_lea.vmem %s0, %s395
      %p397 = scmp.lt.s32.totalorder %s22, 1
      %s398 = scalar_select %p397, %s22, 1
      %s399 = smul.addr %s398, 2
      %s400 = smul.addr %s399, 4
      %s401 = scalar_lea.vmem %s1, %s400
      %p402 = scmp.lt.s32.totalorder %s22, 1
      %s403 = scalar_select %p402, %s22, 1
      %s404 = smul.addr %s403, 4
      %s405 = smul.addr %s404, 8
      %s406 = scalar_lea.vmem %s11, %s405
      %v407 = vld [vmem:[%s396] sm:$0xff]
      %v408 = vld [vmem:[%s396 + $0x8] sm:$0xff]
      %v409 = vld [vmem:[%s396 + $0x10] sm:$0xf]
      %v410 = vld [vmem:[%s396 + $0x18] sm:$0xf]
      %v411 = vld [vmem:[%s401] sm:$0xff]
      %v412 = vld [vmem:[%s8] sm:$0xff]
      %v413 = vld [vmem:[%s8 + $0x8] sm:$0xff]
      %v414 = vld [vmem:[%s2] sm:$0xff]
      %v415 = vld [vmem:[%s2 + $0x8] sm:$0xff]
      %v416 = vld [vmem:[%s3] sm:$0xff]
      %v417 = vld [vmem:[%s3 + $0x8] sm:$0xff]
      %v419 = vcombine.high %v411, %v411
      %vm420 = vcmask 31744
      %v422 = vsel %vm420, %v416, 0
      %v425 = vsel %vm420, %v417, 0
      %vm427 = vcmask 1043456
      %v428 = vsel %vm427, %v411, 0
      %v430 = vsel %vm427, %v419, 0
      %432 = vmatprep.subr.mxu0 0.0
      %433 = vmatpush1.msra.mxu0 0.0
      %434 = vmatprep.subr.mxu0 0.0
      %435 = vmatpush1.msra.mxu0 0.0
      %436 = vmatprep.subr.mxu0 0.0
      %437 = vmatpush1.msra.mxu0 0.0
      %438 = vmatprep.subr.mxu0 0.0
      %439 = vmatpush1.msra.mxu0 0.0
      %440 = vmatprep.subr.mxu0 0.0
      %441 = vmatpush1.msra.mxu0 0.0
      %442 = vmatprep.subr.mxu0 0.0
      %443 = vmatpush1.msra.mxu0 0.0
      %444 = vmatprep.subr.mxu0 0.0
      %445 = vmatpush1.msra.mxu0 0.0
      %446 = vmatprep.subr.mxu0 0.0
      %447 = vmatpush1.msra.mxu0 0.0
      %448 = vmatprep.subr.mxu0 0.0
      %449 = vmatpush1.msra.mxu0 0.0
      %450 = vmatprep.subr.mxu0 0.0
      %451 = vmatpush1.msra.mxu0 0.0
      %452 = vmatprep.subr.mxu0 0.0
      %453 = vmatpush1.msra.mxu0 0.0
      %454 = vmatprep.subr.mxu0 0.0
      %455 = vmatpush1.msra.mxu0 0.0
      %456 = vmatprep.subr.mxu0 0.0
      %457 = vmatpush1.msra.mxu0 0.0
      %458 = vmatprep.subr.mxu0 0.0
      %459 = vmatpush1.msra.mxu0 0.0
      %460 = vmatprep.subr.mxu0 0.0
      %461 = vmatpush1.msra.mxu0 0.0
      %462 = vmatprep.subr.mxu0 %v430
      %463 = vmatpush1.msra.mxu0 %v428
      %464 = vmatprep.subr.mxu0 0.0
      %465 = vmatpush2.msra.mxu0 0.0
      %466 = vmatprep.subr.mxu0 0.0
      %467 = vmatpush2.msra.mxu0 0.0
      %468 = vmatprep.subr.mxu0 0.0
      %469 = vmatpush2.msra.mxu0 0.0
      %470 = vmatprep.subr.mxu0 0.0
      %471 = vmatpush2.msra.mxu0 0.0
      %472 = vmatprep.subr.mxu0 0.0
      %473 = vmatpush2.msra.mxu0 0.0
      %474 = vmatprep.subr.mxu0 0.0
      %475 = vmatpush2.msra.mxu0 0.0
      %476 = vmatprep.subr.mxu0 0.0
      %477 = vmatpush2.msra.mxu0 0.0
      %478 = vmatprep.subr.mxu0 0.0
      %479 = vmatpush2.msra.mxu0 0.0
      %480 = vmatprep.subr.mxu0 0.0
      %481 = vmatpush2.msra.mxu0 0.0
      %482 = vmatprep.subr.mxu0 0.0
      %483 = vmatpush2.msra.mxu0 0.0
      %484 = vmatprep.subr.mxu0 0.0
      %485 = vmatpush2.msra.mxu0 0.0
      %486 = vmatprep.subr.mxu0 0.0
      %487 = vmatpush2.msra.mxu0 0.0
      %488 = vmatprep.subr.mxu0 0.0
      %489 = vmatpush2.msra.mxu0 0.0
      %490 = vmatprep.subr.mxu0 0.0
      %491 = vmatpush2.msra.mxu0 0.0
      %492 = vmatprep.subr.mxu0 0.0
      %493 = vmatpush2.msra.mxu0 0.0
      %494 = vmatprep.subr.mxu0 0.0
      %495 = vmatpush2.msra.mxu0 0.0
      %496 = vmatprep.mubr.f32.mxu0 0.0
      %497 = vmatmul.mubr.f32.gmra.mxu0 %v422
      %v498 = vpop.f32.mrf.mxu0
      %v499 = vadd.f32 0.0, %v498
      %v500 = vpop.f32.mrf.mxu0
      %v501 = vadd.f32 0.0, %v500
      %502 = vmatprep.mubr.f32.mxu0 0.0
      %503 = vmatmul.mubr.f32.gmra.mxu0 %v425
      %v504 = vpop.f32.mrf.mxu0
      %v505 = vadd.f32 0.0, %v504
      %v506 = vpop.f32.mrf.mxu0
      %v507 = vadd.f32 0.0, %v506
      %508 = vdwg.mxu0
      %vm509 = vcmask 97280
      %v511 = vsel %vm509, %v414, 0
      %v514 = vsel %vm509, %v415, 0
      %v517 = vsel %vm427, %v409, 0
      %v520 = vsel %vm427, %v410, 0
      %522 = vmatprep.subr.mxu0 0.0
      %523 = vmatpush1.msra.mxu0 0.0
      %524 = vmatprep.subr.mxu0 0.0
      %525 = vmatpush1.msra.mxu0 0.0
      %526 = vmatprep.subr.mxu0 0.0
      %527 = vmatpush1.msra.mxu0 0.0
      %528 = vmatprep.subr.mxu0 0.0
      %529 = vmatpush1.msra.mxu0 0.0
      %530 = vmatprep.subr.mxu0 0.0
      %531 = vmatpush1.msra.mxu0 0.0
      %532 = vmatprep.subr.mxu0 0.0
      %533 = vmatpush1.msra.mxu0 0.0
      %534 = vmatprep.subr.mxu0 0.0
      %535 = vmatpush1.msra.mxu0 0.0
      %536 = vmatprep.subr.mxu0 0.0
      %537 = vmatpush1.msra.mxu0 0.0
      %538 = vmatprep.subr.mxu0 0.0
      %539 = vmatpush1.msra.mxu0 0.0
      %540 = vmatprep.subr.mxu0 0.0
      %541 = vmatpush1.msra.mxu0 0.0
      %542 = vmatprep.subr.mxu0 0.0
      %543 = vmatpush1.msra.mxu0 0.0
      %544 = vmatprep.subr.mxu0 0.0
      %545 = vmatpush1.msra.mxu0 0.0
      %546 = vmatprep.subr.mxu0 0.0
      %547 = vmatpush1.msra.mxu0 0.0
      %548 = vmatprep.subr.mxu0 0.0
      %549 = vmatpush1.msra.mxu0 0.0
      %550 = vmatprep.subr.mxu0 %v520
      %551 = vmatpush1.msra.mxu0 %v517
      %552 = vmatprep.subr.mxu0 %v408
      %553 = vmatpush1.msra.mxu0 %v407
      %554 = vmatprep.subr.mxu0 0.0
      %555 = vmatpush2.msra.mxu0 0.0
      %556 = vmatprep.subr.mxu0 0.0
      %557 = vmatpush2.msra.mxu0 0.0
      %558 = vmatprep.subr.mxu0 0.0
      %559 = vmatpush2.msra.mxu0 0.0
      %560 = vmatprep.subr.mxu0 0.0
      %561 = vmatpush2.msra.mxu0 0.0
      %562 = vmatprep.subr.mxu0 0.0
      %563 = vmatpush2.msra.mxu0 0.0
      %564 = vmatprep.subr.mxu0 0.0
      %565 = vmatpush2.msra.mxu0 0.0
      %566 = vmatprep.subr.mxu0 0.0
      %567 = vmatpush2.msra.mxu0 0.0
      %568 = vmatprep.subr.mxu0 0.0
      %569 = vmatpush2.msra.mxu0 0.0
      %570 = vmatprep.subr.mxu0 0.0
      %571 = vmatpush2.msra.mxu0 0.0
      %572 = vmatprep.subr.mxu0 0.0
      %573 = vmatpush2.msra.mxu0 0.0
      %574 = vmatprep.subr.mxu0 0.0
      %575 = vmatpush2.msra.mxu0 0.0
      %576 = vmatprep.subr.mxu0 0.0
      %577 = vmatpush2.msra.mxu0 0.0
      %578 = vmatprep.subr.mxu0 0.0
      %579 = vmatpush2.msra.mxu0 0.0
      %580 = vmatprep.subr.mxu0 0.0
      %581 = vmatpush2.msra.mxu0 0.0
      %582 = vmatprep.subr.mxu0 0.0
      %583 = vmatpush2.msra.mxu0 0.0
      %584 = vmatprep.subr.mxu0 0.0
      %585 = vmatpush2.msra.mxu0 0.0
      %586 = vmatprep.mubr.f32.mxu0 0.0
      %587 = vmatmul.mubr.f32.gmra.mxu0 %v511
      %v588 = vpop.f32.mrf.mxu0
      %v589 = vadd.f32 %v499, %v588
      %v590 = vpop.f32.mrf.mxu0
      %v591 = vadd.f32 %v501, %v590
      %592 = vmatprep.mubr.f32.mxu0 0.0
      %593 = vmatmul.mubr.f32.gmra.mxu0 %v514
      %v594 = vpop.f32.mrf.mxu0
      %v595 = vadd.f32 %v505, %v594
      %v596 = vpop.f32.mrf.mxu0
      %v597 = vadd.f32 %v507, %v596
      %598 = vdwg.mxu0
      %600 = vset.pattern.permute.xlu0 0
      %601 = vperm.xlu0 %600, %v412
      %v602 = vpop.permute.xlu0 %601
      %605 = vset.pattern.permute.xlu0 0
      %606 = vperm.xlu0 %605, %v413
      %v607 = vpop.permute.xlu0 %606
      %v609 = vadd.f32 %v589, %v602
      %v610 = vadd.f32 %v591, %v602
      %v611 = vadd.f32 %v595, %v607
      %v612 = vadd.f32 %v597, %v607
      %v613 = vmax.f32 %v609, 0.0
      %v614 = vmax.f32 %v610, 0.0
      %v615 = vmax.f32 %v611, 0.0
      %v616 = vmax.f32 %v612, 0.0
      %v617 = vadd.f32 %v613, %v614
      %618 = vadd.xlane.f32.xlu0 %v617
      %v619 = vpop.xlane.xlu0 %618
      %v620 = vadd.f32 %v615, %v616
      %621 = vadd.xlane.f32.xlu0 %v620
      %v622 = vpop.xlane.xlu0 %621
      %v623 = vrcp.pop 256.0
      %v624 = vmul.f32 %v619, %v623
      %v625 = vmul.f32 %v622, %v623
      %v626 = vxor.u32 %v624, 2147483648
      %v627 = vxor.u32 %v625, 2147483648
      %v628 = vmul.f32 %v626, 1.442695
      %v629 = vpow.pop %v628
      %v630 = vmul.f32 %v627, 1.442695
      %v631 = vpow.pop %v630
      %v632 = vadd.f32 %v629, 1.0
      %v633 = vadd.f32 %v631, 1.0
      %v634 = vrcp.pop %v632
      %v635 = vmul.f32 1.0, %v634
      %v636 = vrcp.pop %v633
      %v637 = vmul.f32 1.0, %v636
      %v638 = vmul.f32 %v613, %v635
      %v639 = vmul.f32 %v614, %v635
      %v640 = vmul.f32 %v615, %v637
      %v641 = vmul.f32 %v616, %v637
      %v642 = vld [vmem:[%s10] sm:$0xff]
      %v643 = vld [vmem:[%s10 + $0x8] sm:$0xff]
      %v644 = vld [vmem:[%s10 + $0x10] sm:$0xff]
      %v645 = vld [vmem:[%s10 + $0x18] sm:$0xff]
      %v646 = vld [vmem:[%s10 + $0x20] sm:$0xff]
      %v647 = vld [vmem:[%s10 + $0x28] sm:$0xff]
      %v648 = vld [vmem:[%s10 + $0x30] sm:$0xff]
      %v649 = vld [vmem:[%s10 + $0x38] sm:$0xff]
      %v650 = vld [vmem:[%s10 + $0x40] sm:$0xff]
      %v651 = vld [vmem:[%s10 + $0x48] sm:$0xff]
      %v652 = vld [vmem:[%s10 + $0x50] sm:$0xff]
      %v653 = vld [vmem:[%s10 + $0x58] sm:$0xff]
      %v654 = vld [vmem:[%s10 + $0x60] sm:$0xff]
      %v655 = vld [vmem:[%s10 + $0x68] sm:$0xff]
      %v656 = vld [vmem:[%s10 + $0x70] sm:$0xff]
      %v657 = vld [vmem:[%s10 + $0x78] sm:$0xff]
      %v658 = vld [vmem:[%s10 + $0x80] sm:$0xff]
      %v659 = vld [vmem:[%s10 + $0x88] sm:$0xff]
      %v660 = vld [vmem:[%s10 + $0x90] sm:$0xff]
      %v661 = vld [vmem:[%s10 + $0x98] sm:$0xff]
      %v662 = vld [vmem:[%s10 + $0xa0] sm:$0xff]
      %v663 = vld [vmem:[%s10 + $0xa8] sm:$0xff]
      %v664 = vld [vmem:[%s10 + $0xb0] sm:$0xff]
      %v665 = vld [vmem:[%s10 + $0xb8] sm:$0xff]
      %v666 = vld [vmem:[%s10 + $0xc0] sm:$0xff]
      %v667 = vld [vmem:[%s10 + $0xc8] sm:$0xff]
      %v668 = vld [vmem:[%s10 + $0xd0] sm:$0xff]
      %v669 = vld [vmem:[%s10 + $0xd8] sm:$0xff]
      %v670 = vld [vmem:[%s10 + $0xe0] sm:$0xff]
      %v671 = vld [vmem:[%s10 + $0xe8] sm:$0xff]
      %v672 = vld [vmem:[%s10 + $0xf0] sm:$0xff]
      %v673 = vld [vmem:[%s10 + $0xf8] sm:$0xff]
      %674 = vmatprep.subr.mxu0 0.0
      %675 = vmatpush1.msra.mxu0 %v657
      %676 = vmatprep.subr.mxu0 0.0
      %677 = vmatpush1.msra.mxu0 %v656
      %678 = vmatprep.subr.mxu0 0.0
      %679 = vmatpush1.msra.mxu0 %v655
      %680 = vmatprep.subr.mxu0 0.0
      %681 = vmatpush1.msra.mxu0 %v654
      %682 = vmatprep.subr.mxu0 0.0
      %683 = vmatpush1.msra.mxu0 %v653
      %684 = vmatprep.subr.mxu0 0.0
      %685 = vmatpush1.msra.mxu0 %v652
      %686 = vmatprep.subr.mxu0 0.0
      %687 = vmatpush1.msra.mxu0 %v651
      %688 = vmatprep.subr.mxu0 0.0
      %689 = vmatpush1.msra.mxu0 %v650
      %690 = vmatprep.subr.mxu0 0.0
      %691 = vmatpush1.msra.mxu0 %v649
      %692 = vmatprep.subr.mxu0 0.0
      %693 = vmatpush1.msra.mxu0 %v648
      %694 = vmatprep.subr.mxu0 0.0
      %695 = vmatpush1.msra.mxu0 %v647
      %696 = vmatprep.subr.mxu0 0.0
      %697 = vmatpush1.msra.mxu0 %v646
      %698 = vmatprep.subr.mxu0 0.0
      %699 = vmatpush1.msra.mxu0 %v645
      %700 = vmatprep.subr.mxu0 0.0
      %701 = vmatpush1.msra.mxu0 %v644
      %702 = vmatprep.subr.mxu0 0.0
      %703 = vmatpush1.msra.mxu0 %v643
      %704 = vmatprep.subr.mxu0 0.0
      %705 = vmatpush1.msra.mxu0 %v642
      %706 = vmatprep.subr.mxu0 0.0
      %707 = vmatpush2.msra.mxu0 %v673
      %708 = vmatprep.subr.mxu0 0.0
      %709 = vmatpush2.msra.mxu0 %v672
      %710 = vmatprep.subr.mxu0 0.0
      %711 = vmatpush2.msra.mxu0 %v671
      %712 = vmatprep.subr.mxu0 0.0
      %713 = vmatpush2.msra.mxu0 %v670
      %714 = vmatprep.subr.mxu0 0.0
      %715 = vmatpush2.msra.mxu0 %v669
      %716 = vmatprep.subr.mxu0 0.0
      %717 = vmatpush2.msra.mxu0 %v668
      %718 = vmatprep.subr.mxu0 0.0
      %719 = vmatpush2.msra.mxu0 %v667
      %720 = vmatprep.subr.mxu0 0.0
      %721 = vmatpush2.msra.mxu0 %v666
      %722 = vmatprep.subr.mxu0 0.0
      %723 = vmatpush2.msra.mxu0 %v665
      %724 = vmatprep.subr.mxu0 0.0
      %725 = vmatpush2.msra.mxu0 %v664
      %726 = vmatprep.subr.mxu0 0.0
      %727 = vmatpush2.msra.mxu0 %v663
      %728 = vmatprep.subr.mxu0 0.0
      %729 = vmatpush2.msra.mxu0 %v662
      %730 = vmatprep.subr.mxu0 0.0
      %731 = vmatpush2.msra.mxu0 %v661
      %732 = vmatprep.subr.mxu0 0.0
      %733 = vmatpush2.msra.mxu0 %v660
      %734 = vmatprep.subr.mxu0 0.0
      %735 = vmatpush2.msra.mxu0 %v659
      %736 = vmatprep.subr.mxu0 0.0
      %737 = vmatpush2.msra.mxu0 %v658
      %738 = vmatprep.mubr.f32.mxu0 %v639
      %739 = vmatmul.mubr.f32.gmra.mxu0 %v638
      %v740 = vpop.f32.mrf.mxu0
      %v741 = vadd.f32 0.0, %v740
      %v742 = vpop.f32.mrf.mxu0
      %743 = vmatprep.mubr.f32.mxu0 %v641
      %744 = vmatmul.mubr.f32.gmra.mxu0 %v640
      %v745 = vpop.f32.mrf.mxu0
      %v746 = vadd.f32 0.0, %v745
      %v747 = vpop.f32.mrf.mxu0
      %748 = vdwg.mxu0
      %v749 = vxor.u32 %v741, 2147483648
      %v750 = vxor.u32 %v746, 2147483648
      %v751 = vmul.f32 %v749, 1.442695
      %v752 = vpow.pop %v751
      %v753 = vmul.f32 %v750, 1.442695
      %v754 = vpow.pop %v753
      %v755 = vadd.f32 %v752, 1.0
      %v756 = vadd.f32 %v754, 1.0
      %v757 = vrcp.pop %v755
      %v758 = vmul.f32 1.0, %v757
      %v759 = vrcp.pop %v756
      %v760 = vmul.f32 1.0, %v759
      %v761 = vld [vmem:[%s9] sm:$0xff]
      %v762 = vld [vmem:[%s9 + $0x8] sm:$0xff]
      %v763 = vld [vmem:[%s9 + $0x10] sm:$0xff]
      %v764 = vld [vmem:[%s9 + $0x18] sm:$0xff]
      %vm765 = vcmask 130048
      %v767 = vsel %vm765, %v758, 0
      %v770 = vsel %vm765, %v760, 0
      %772 = vmatprep.subr.mxu0 0.0
      %773 = vmatpush1.msra.mxu0 0.0
      %774 = vmatprep.subr.mxu0 0.0
      %775 = vmatpush1.msra.mxu0 0.0
      %776 = vmatprep.subr.mxu0 0.0
      %777 = vmatpush1.msra.mxu0 0.0
      %778 = vmatprep.subr.mxu0 0.0
      %779 = vmatpush1.msra.mxu0 0.0
      %780 = vmatprep.subr.mxu0 0.0
      %781 = vmatpush1.msra.mxu0 0.0
      %782 = vmatprep.subr.mxu0 0.0
      %783 = vmatpush1.msra.mxu0 0.0
      %784 = vmatprep.subr.mxu0 0.0
      %785 = vmatpush1.msra.mxu0 0.0
      %786 = vmatprep.subr.mxu0 0.0
      %787 = vmatpush1.msra.mxu0 0.0
      %788 = vmatprep.subr.mxu0 0.0
      %789 = vmatpush1.msra.mxu0 0.0
      %790 = vmatprep.subr.mxu0 0.0
      %791 = vmatpush1.msra.mxu0 0.0
      %792 = vmatprep.subr.mxu0 0.0
      %793 = vmatpush1.msra.mxu0 0.0
      %794 = vmatprep.subr.mxu0 0.0
      %795 = vmatpush1.msra.mxu0 0.0
      %796 = vmatprep.subr.mxu0 0.0
      %797 = vmatpush1.msra.mxu0 0.0
      %798 = vmatprep.subr.mxu0 0.0
      %799 = vmatpush1.msra.mxu0 0.0
      %800 = vmatprep.subr.mxu0 %v764
      %801 = vmatpush1.msra.mxu0 %v763
      %802 = vmatprep.subr.mxu0 %v762
      %803 = vmatpush1.msra.mxu0 %v761
      %804 = vmatprep.subr.mxu0 0.0
      %805 = vmatpush2.msra.mxu0 0.0
      %806 = vmatprep.subr.mxu0 0.0
      %807 = vmatpush2.msra.mxu0 0.0
      %808 = vmatprep.subr.mxu0 0.0
      %809 = vmatpush2.msra.mxu0 0.0
      %810 = vmatprep.subr.mxu0 0.0
      %811 = vmatpush2.msra.mxu0 0.0
      %812 = vmatprep.subr.mxu0 0.0
      %813 = vmatpush2.msra.mxu0 0.0
      %814 = vmatprep.subr.mxu0 0.0
      %815 = vmatpush2.msra.mxu0 0.0
      %816 = vmatprep.subr.mxu0 0.0
      %817 = vmatpush2.msra.mxu0 0.0
      %818 = vmatprep.subr.mxu0 0.0
      %819 = vmatpush2.msra.mxu0 0.0
      %820 = vmatprep.subr.mxu0 0.0
      %821 = vmatpush2.msra.mxu0 0.0
      %822 = vmatprep.subr.mxu0 0.0
      %823 = vmatpush2.msra.mxu0 0.0
      %824 = vmatprep.subr.mxu0 0.0
      %825 = vmatpush2.msra.mxu0 0.0
      %826 = vmatprep.subr.mxu0 0.0
      %827 = vmatpush2.msra.mxu0 0.0
      %828 = vmatprep.subr.mxu0 0.0
      %829 = vmatpush2.msra.mxu0 0.0
      %830 = vmatprep.subr.mxu0 0.0
      %831 = vmatpush2.msra.mxu0 0.0
      %832 = vmatprep.subr.mxu0 0.0
      %833 = vmatpush2.msra.mxu0 0.0
      %834 = vmatprep.subr.mxu0 0.0
      %835 = vmatpush2.msra.mxu0 0.0
      %836 = vmatprep.mubr.f32.mxu0 0.0
      %837 = vmatmul.mubr.f32.gmra.mxu0 %v767
      %v838 = vpop.f32.mrf.mxu0
      %v839 = vadd.f32 0.0, %v838
      %v840 = vpop.f32.mrf.mxu0
      %v841 = vadd.f32 0.0, %v840
      %842 = vmatprep.mubr.f32.mxu0 0.0
      %843 = vmatmul.mubr.f32.gmra.mxu0 %v770
      %v844 = vpop.f32.mrf.mxu0
      %v845 = vadd.f32 0.0, %v844
      %v846 = vpop.f32.mrf.mxu0
      %v847 = vadd.f32 0.0, %v846
      %848 = vdwg.mxu0
      %v849 = vmul.f32 %v638, %v839
      %v850 = vmul.f32 %v639, %v841
      %v851 = vmul.f32 %v640, %v845
      %v852 = vmul.f32 %v641, %v847
      %v853 = vadd.f32 %v849, %v850
      %854 = vadd.xlane.f32.xlu0 %v853
      %v855 = vpop.xlane.xlu0 %854
      %v856 = vadd.f32 %v851, %v852
      %857 = vadd.xlane.f32.xlu0 %v856
      %v858 = vpop.xlane.xlu0 %857
      %v859 = vmul.f32 %v855, %v623
      %v860 = vmul.f32 %v858, %v623
      %v861 = vld [vmem:[%s6] sm:$0xff]
      %v862 = vld [vmem:[%s6 + $0x8] sm:$0xff]
      %863 = vset.pattern.permute.xlu0 2
      %864 = vperm.xlu0 %863, %v412
      %v865 = vpop.permute.xlu0 %864
      %867 = vset.pattern.permute.xlu0 2
      %868 = vperm.xlu0 %867, %v413
      %v869 = vpop.permute.xlu0 %868
      %v872 = vsel %vm765, %v861, 0
      %v875 = vsel %vm765, %v862, 0
      %877 = vmatprep.subr.mxu0 0.0
      %878 = vmatpush1.msra.mxu0 0.0
      %879 = vmatprep.subr.mxu0 0.0
      %880 = vmatpush1.msra.mxu0 0.0
      %881 = vmatprep.subr.mxu0 0.0
      %882 = vmatpush1.msra.mxu0 0.0
      %883 = vmatprep.subr.mxu0 0.0
      %884 = vmatpush1.msra.mxu0 0.0
      %885 = vmatprep.subr.mxu0 0.0
      %886 = vmatpush1.msra.mxu0 0.0
      %887 = vmatprep.subr.mxu0 0.0
      %888 = vmatpush1.msra.mxu0 0.0
      %889 = vmatprep.subr.mxu0 0.0
      %890 = vmatpush1.msra.mxu0 0.0
      %891 = vmatprep.subr.mxu0 0.0
      %892 = vmatpush1.msra.mxu0 0.0
      %893 = vmatprep.subr.mxu0 0.0
      %894 = vmatpush1.msra.mxu0 0.0
      %895 = vmatprep.subr.mxu0 0.0
      %896 = vmatpush1.msra.mxu0 0.0
      %897 = vmatprep.subr.mxu0 0.0
      %898 = vmatpush1.msra.mxu0 0.0
      %899 = vmatprep.subr.mxu0 0.0
      %900 = vmatpush1.msra.mxu0 0.0
      %901 = vmatprep.subr.mxu0 0.0
      %902 = vmatpush1.msra.mxu0 0.0
      %903 = vmatprep.subr.mxu0 0.0
      %904 = vmatpush1.msra.mxu0 0.0
      %905 = vmatprep.subr.mxu0 0.0
      %906 = vmatpush1.msra.mxu0 %v860
      %907 = vmatprep.subr.mxu0 0.0
      %908 = vmatpush1.msra.mxu0 %v859
      %909 = vmatprep.subr.mxu0 0.0
      %910 = vmatpush2.msra.mxu0 0.0
      %911 = vmatprep.subr.mxu0 0.0
      %912 = vmatpush2.msra.mxu0 0.0
      %913 = vmatprep.subr.mxu0 0.0
      %914 = vmatpush2.msra.mxu0 0.0
      %915 = vmatprep.subr.mxu0 0.0
      %916 = vmatpush2.msra.mxu0 0.0
      %917 = vmatprep.subr.mxu0 0.0
      %918 = vmatpush2.msra.mxu0 0.0
      %919 = vmatprep.subr.mxu0 0.0
      %920 = vmatpush2.msra.mxu0 0.0
      %921 = vmatprep.subr.mxu0 0.0
      %922 = vmatpush2.msra.mxu0 0.0
      %923 = vmatprep.subr.mxu0 0.0
      %924 = vmatpush2.msra.mxu0 0.0
      %925 = vmatprep.subr.mxu0 0.0
      %926 = vmatpush2.msra.mxu0 0.0
      %927 = vmatprep.subr.mxu0 0.0
      %928 = vmatpush2.msra.mxu0 0.0
      %929 = vmatprep.subr.mxu0 0.0
      %930 = vmatpush2.msra.mxu0 0.0
      %931 = vmatprep.subr.mxu0 0.0
      %932 = vmatpush2.msra.mxu0 0.0
      %933 = vmatprep.subr.mxu0 0.0
      %934 = vmatpush2.msra.mxu0 0.0
      %935 = vmatprep.subr.mxu0 0.0
      %936 = vmatpush2.msra.mxu0 0.0
      %937 = vmatprep.subr.mxu0 0.0
      %938 = vmatpush2.msra.mxu0 0.0
      %939 = vmatprep.subr.mxu0 0.0
      %940 = vmatpush2.msra.mxu0 0.0
      %941 = vmatprep.mubr.f32.mxu0 0.0
      %942 = vmatmul.mubr.f32.gmra.mxu0 %v872
      %v943 = vpop.f32.mrf.mxu0
      %v944 = vadd.f32 %v865, %v943
      %v945 = vpop.f32.mrf.mxu0
      %946 = vmatprep.mubr.f32.mxu0 0.0
      %947 = vmatmul.mubr.f32.gmra.mxu0 %v875
      %v948 = vpop.f32.mrf.mxu0
      %v949 = vadd.f32 %v869, %v948
      %v950 = vpop.f32.mrf.mxu0
      %951 = vdwg.mxu0
      %v952 = vld [vmem:[%s7] sm:$0xff]
      %v953 = vld [vmem:[%s7 + $0x8] sm:$0xff]
      %954 = vset.pattern.permute.xlu0 3
      %955 = vperm.xlu0 %954, %v412
      %v956 = vpop.permute.xlu0 %955
      %958 = vset.pattern.permute.xlu0 3
      %959 = vperm.xlu0 %958, %v413
      %v960 = vpop.permute.xlu0 %959
      %v963 = vsel %vm765, %v952, 0
      %v966 = vsel %vm765, %v953, 0
      %968 = vmatprep.subr.mxu0 0.0
      %969 = vmatpush1.msra.mxu0 0.0
      %970 = vmatprep.subr.mxu0 0.0
      %971 = vmatpush1.msra.mxu0 0.0
      %972 = vmatprep.subr.mxu0 0.0
      %973 = vmatpush1.msra.mxu0 0.0
      %974 = vmatprep.subr.mxu0 0.0
      %975 = vmatpush1.msra.mxu0 0.0
      %976 = vmatprep.subr.mxu0 0.0
      %977 = vmatpush1.msra.mxu0 0.0
      %978 = vmatprep.subr.mxu0 0.0
      %979 = vmatpush1.msra.mxu0 0.0
      %980 = vmatprep.subr.mxu0 0.0
      %981 = vmatpush1.msra.mxu0 0.0
      %982 = vmatprep.subr.mxu0 0.0
      %983 = vmatpush1.msra.mxu0 0.0
      %984 = vmatprep.subr.mxu0 0.0
      %985 = vmatpush1.msra.mxu0 0.0
      %986 = vmatprep.subr.mxu0 0.0
      %987 = vmatpush1.msra.mxu0 0.0
      %988 = vmatprep.subr.mxu0 0.0
      %989 = vmatpush1.msra.mxu0 0.0
      %990 = vmatprep.subr.mxu0 0.0
      %991 = vmatpush1.msra.mxu0 0.0
      %992 = vmatprep.subr.mxu0 0.0
      %993 = vmatpush1.msra.mxu0 0.0
      %994 = vmatprep.subr.mxu0 0.0
      %995 = vmatpush1.msra.mxu0 0.0
      %996 = vmatprep.subr.mxu0 0.0
      %997 = vmatpush1.msra.mxu0 %v949
      %998 = vmatprep.subr.mxu0 0.0
      %999 = vmatpush1.msra.mxu0 %v944
      %1000 = vmatprep.subr.mxu0 0.0
      %1001 = vmatpush2.msra.mxu0 0.0
      %1002 = vmatprep.subr.mxu0 0.0
      %1003 = vmatpush2.msra.mxu0 0.0
      %1004 = vmatprep.subr.mxu0 0.0
      %1005 = vmatpush2.msra.mxu0 0.0
      %1006 = vmatprep.subr.mxu0 0.0
      %1007 = vmatpush2.msra.mxu0 0.0
      %1008 = vmatprep.subr.mxu0 0.0
      %1009 = vmatpush2.msra.mxu0 0.0
      %1010 = vmatprep.subr.mxu0 0.0
      %1011 = vmatpush2.msra.mxu0 0.0
      %1012 = vmatprep.subr.mxu0 0.0
      %1013 = vmatpush2.msra.mxu0 0.0
      %1014 = vmatprep.subr.mxu0 0.0
      %1015 = vmatpush2.msra.mxu0 0.0
      %1016 = vmatprep.subr.mxu0 0.0
      %1017 = vmatpush2.msra.mxu0 0.0
      %1018 = vmatprep.subr.mxu0 0.0
      %1019 = vmatpush2.msra.mxu0 0.0
      %1020 = vmatprep.subr.mxu0 0.0
      %1021 = vmatpush2.msra.mxu0 0.0
      %1022 = vmatprep.subr.mxu0 0.0
      %1023 = vmatpush2.msra.mxu0 0.0
      %1024 = vmatprep.subr.mxu0 0.0
      %1025 = vmatpush2.msra.mxu0 0.0
      %1026 = vmatprep.subr.mxu0 0.0
      %1027 = vmatpush2.msra.mxu0 0.0
      %1028 = vmatprep.subr.mxu0 0.0
      %1029 = vmatpush2.msra.mxu0 0.0
      %1030 = vmatprep.subr.mxu0 0.0
      %1031 = vmatpush2.msra.mxu0 0.0
      %1032 = vmatprep.mubr.f32.mxu0 0.0
      %1033 = vmatmul.mubr.f32.gmra.mxu0 %v963
      %v1034 = vpop.f32.mrf.mxu0
      %v1035 = vadd.f32 %v956, %v1034
      %v1036 = vpop.f32.mrf.mxu0
      %1037 = vmatprep.mubr.f32.mxu0 0.0
      %1038 = vmatmul.mubr.f32.gmra.mxu0 %v966
      %v1039 = vpop.f32.mrf.mxu0
      %v1040 = vadd.f32 %v960, %v1039
      %v1041 = vpop.f32.mrf.mxu0
      %1042 = vdwg.mxu0
      %v1043 = vxor.u32 %v1035, 2147483648
      %v1044 = vxor.u32 %v1040, 2147483648
      %v1045 = vmul.f32 %v1043, 1.442695
      %v1046 = vpow.pop %v1045
      %v1047 = vmul.f32 %v1044, 1.442695
      %v1048 = vpow.pop %v1047
      %v1049 = vadd.f32 %v1046, 1.0
      %v1050 = vadd.f32 %v1048, 1.0
      %v1051 = vrcp.pop %v1049
      %v1052 = vmul.f32 1.0, %v1051
      %v1053 = vrcp.pop %v1050
      %v1054 = vmul.f32 1.0, %v1053
      %1056 = vset.pattern.permute.xlu0 0
      %1057 = vperm.xlu0 %1056, %v1052
      %v1058 = vpop.permute.xlu0 %1057
      %1061 = vset.pattern.permute.xlu0 0
      %1062 = vperm.xlu0 %1061, %v1054
      %v1063 = vpop.permute.xlu0 %1062
      %v1065 = vmul.f32 %v849, %v1058
      %v1066 = vmul.f32 %v850, %v1058
      %v1067 = vmul.f32 %v851, %v1063
      %v1068 = vmul.f32 %v852, %v1063
      %vm1069 = vcmask 261120
      %1070 = vst.msk [vmem:[#allocation2] sm:$0xff] %vm1069, 0.0
      %1071 = vst.msk [vmem:[#allocation2 + $0x18] sm:$0xff] %vm1069, 0.0
      %vm1072 = vcmask 523520
      %1073 = vst.msk [vmem:[#allocation2 + $0x10] sm:$0xff] %vm1072, 0.0
      %1074 = vst.msk [vmem:[#allocation2 + $0x28] sm:$0xff] %vm1072, 0.0
      %1079 = vrot.lane.b32.xlu0 %v1065, 32
      %v1080 = vpop.permute.xlu0 %1079
      %1081 = vrot.lane.b32.xlu0 %v1066, 32
      %v1082 = vpop.permute.xlu0 %1081
      %1083 = vrot.lane.b32.xlu0 %v1067, 32
      %v1084 = vpop.permute.xlu0 %1083
      %1085 = vrot.lane.b32.xlu0 %v1068, 32
      %v1086 = vpop.permute.xlu0 %1085
      %v1087 = vsel %vm1069, %v1080, %v1082
      %v1088 = vsel %vm1069, %v1084, %v1086
      %vm1095 = vcmask 1047808
      %1096 = vst.msk [vmem:[#allocation2] sm:$0xff] %vm1095, %v1080
      %1097 = vst [vmem:[#allocation2 + $0x8] sm:$0xff] %v1087
      %1098 = vst.msk [vmem:[#allocation2 + $0x10] sm:$0xff] %vm1069, %v1082
      %1099 = vst.msk [vmem:[#allocation2 + $0x18] sm:$0xff] %vm1095, %v1084
      %1100 = vst [vmem:[#allocation2 + $0x20] sm:$0xff] %v1088
      %1101 = vst.msk [vmem:[#allocation2 + $0x28] sm:$0xff] %vm1069, %v1086
      %v1102 = vld [vmem:[%s5] sm:$0xff]
      %v1103 = vld [vmem:[%s5 + $0x8] sm:$0xff]
      %1104 = vset.pattern.permute.xlu0 1
      %1105 = vperm.xlu0 %1104, %v412
      %v1106 = vpop.permute.xlu0 %1105
      %1108 = vset.pattern.permute.xlu0 1
      %1109 = vperm.xlu0 %1108, %v413
      %v1110 = vpop.permute.xlu0 %1109
      %v1113 = vsel %vm420, %v1102, 0
      %v1116 = vsel %vm420, %v1103, 0
      %1118 = vmatprep.subr.mxu0 0.0
      %1119 = vmatpush1.msra.mxu0 0.0
      %1120 = vmatprep.subr.mxu0 0.0
      %1121 = vmatpush1.msra.mxu0 0.0
      %1122 = vmatprep.subr.mxu0 0.0
      %1123 = vmatpush1.msra.mxu0 0.0
      %1124 = vmatprep.subr.mxu0 0.0
      %1125 = vmatpush1.msra.mxu0 0.0
      %1126 = vmatprep.subr.mxu0 0.0
      %1127 = vmatpush1.msra.mxu0 0.0
      %1128 = vmatprep.subr.mxu0 0.0
      %1129 = vmatpush1.msra.mxu0 0.0
      %1130 = vmatprep.subr.mxu0 0.0
      %1131 = vmatpush1.msra.mxu0 0.0
      %1132 = vmatprep.subr.mxu0 0.0
      %1133 = vmatpush1.msra.mxu0 0.0
      %1134 = vmatprep.subr.mxu0 0.0
      %1135 = vmatpush1.msra.mxu0 0.0
      %1136 = vmatprep.subr.mxu0 0.0
      %1137 = vmatpush1.msra.mxu0 0.0
      %1138 = vmatprep.subr.mxu0 0.0
      %1139 = vmatpush1.msra.mxu0 0.0
      %1140 = vmatprep.subr.mxu0 0.0
      %1141 = vmatpush1.msra.mxu0 0.0
      %1142 = vmatprep.subr.mxu0 0.0
      %1143 = vmatpush1.msra.mxu0 0.0
      %1144 = vmatprep.subr.mxu0 0.0
      %1145 = vmatpush1.msra.mxu0 0.0
      %1146 = vmatprep.subr.mxu0 0.0
      %1147 = vmatpush1.msra.mxu0 0.0
      %1148 = vmatprep.subr.mxu0 %v430
      %1149 = vmatpush1.msra.mxu0 %v428
      %1150 = vmatprep.subr.mxu0 0.0
      %1151 = vmatpush2.msra.mxu0 0.0
      %1152 = vmatprep.subr.mxu0 0.0
      %1153 = vmatpush2.msra.mxu0 0.0
      %1154 = vmatprep.subr.mxu0 0.0
      %1155 = vmatpush2.msra.mxu0 0.0
      %1156 = vmatprep.subr.mxu0 0.0
      %1157 = vmatpush2.msra.mxu0 0.0
      %1158 = vmatprep.subr.mxu0 0.0
      %1159 = vmatpush2.msra.mxu0 0.0
      %1160 = vmatprep.subr.mxu0 0.0
      %1161 = vmatpush2.msra.mxu0 0.0
      %1162 = vmatprep.subr.mxu0 0.0
      %1163 = vmatpush2.msra.mxu0 0.0
      %1164 = vmatprep.subr.mxu0 0.0
      %1165 = vmatpush2.msra.mxu0 0.0
      %1166 = vmatprep.subr.mxu0 0.0
      %1167 = vmatpush2.msra.mxu0 0.0
      %1168 = vmatprep.subr.mxu0 0.0
      %1169 = vmatpush2.msra.mxu0 0.0
      %1170 = vmatprep.subr.mxu0 0.0
      %1171 = vmatpush2.msra.mxu0 0.0
      %1172 = vmatprep.subr.mxu0 0.0
      %1173 = vmatpush2.msra.mxu0 0.0
      %1174 = vmatprep.subr.mxu0 0.0
      %1175 = vmatpush2.msra.mxu0 0.0
      %1176 = vmatprep.subr.mxu0 0.0
      %1177 = vmatpush2.msra.mxu0 0.0
      %1178 = vmatprep.subr.mxu0 0.0
      %1179 = vmatpush2.msra.mxu0 0.0
      %1180 = vmatprep.subr.mxu0 0.0
      %1181 = vmatpush2.msra.mxu0 0.0
      %1182 = vmatprep.mubr.f32.mxu0 0.0
      %1183 = vmatmul.mubr.f32.gmra.mxu0 %v1113
      %v1184 = vpop.f32.mrf.mxu0
      %v1185 = vadd.f32 %v1106, %v1184
      %v1186 = vpop.f32.mrf.mxu0
      %v1187 = vadd.f32 %v1106, %v1186
      %1188 = vmatprep.mubr.f32.mxu0 0.0
      %1189 = vmatmul.mubr.f32.gmra.mxu0 %v1116
      %v1190 = vpop.f32.mrf.mxu0
      %v1191 = vadd.f32 %v1110, %v1190
      %v1192 = vpop.f32.mrf.mxu0
      %v1193 = vadd.f32 %v1110, %v1192
      %1194 = vdwg.mxu0
      %v1195 = vld [vmem:[#allocation2] sm:$0xff]
      %v1196 = vld [vmem:[#allocation2 + $0x8] sm:$0xff]
      %v1197 = vld [vmem:[#allocation2 + $0x18] sm:$0xff]
      %v1198 = vld [vmem:[#allocation2 + $0x20] sm:$0xff]
      %v1199 = vld [vmem:[%s4] sm:$0xff]
      %v1200 = vld [vmem:[%s4 + $0x8] sm:$0xff]
      %v1202 = vsel %vm765, %v1199, 0
      %v1205 = vsel %vm765, %v1200, 0
      %1207 = vmatprep.subr.mxu0 0.0
      %1208 = vmatpush1.msra.mxu0 0.0
      %1209 = vmatprep.subr.mxu0 0.0
      %1210 = vmatpush1.msra.mxu0 0.0
      %1211 = vmatprep.subr.mxu0 0.0
      %1212 = vmatpush1.msra.mxu0 0.0
      %1213 = vmatprep.subr.mxu0 0.0
      %1214 = vmatpush1.msra.mxu0 0.0
      %1215 = vmatprep.subr.mxu0 0.0
      %1216 = vmatpush1.msra.mxu0 0.0
      %1217 = vmatprep.subr.mxu0 0.0
      %1218 = vmatpush1.msra.mxu0 0.0
      %1219 = vmatprep.subr.mxu0 0.0
      %1220 = vmatpush1.msra.mxu0 0.0
      %1221 = vmatprep.subr.mxu0 0.0
      %1222 = vmatpush1.msra.mxu0 0.0
      %1223 = vmatprep.subr.mxu0 0.0
      %1224 = vmatpush1.msra.mxu0 0.0
      %1225 = vmatprep.subr.mxu0 0.0
      %1226 = vmatpush1.msra.mxu0 0.0
      %1227 = vmatprep.subr.mxu0 0.0
      %1228 = vmatpush1.msra.mxu0 0.0
      %1229 = vmatprep.subr.mxu0 0.0
      %1230 = vmatpush1.msra.mxu0 0.0
      %1231 = vmatprep.subr.mxu0 0.0
      %1232 = vmatpush1.msra.mxu0 0.0
      %1233 = vmatprep.subr.mxu0 0.0
      %1234 = vmatpush1.msra.mxu0 0.0
      %1235 = vmatprep.subr.mxu0 %v1198
      %1236 = vmatpush1.msra.mxu0 %v1197
      %1237 = vmatprep.subr.mxu0 %v1196
      %1238 = vmatpush1.msra.mxu0 %v1195
      %1239 = vmatprep.subr.mxu0 0.0
      %1240 = vmatpush2.msra.mxu0 0.0
      %1241 = vmatprep.subr.mxu0 0.0
      %1242 = vmatpush2.msra.mxu0 0.0
      %1243 = vmatprep.subr.mxu0 0.0
      %1244 = vmatpush2.msra.mxu0 0.0
      %1245 = vmatprep.subr.mxu0 0.0
      %1246 = vmatpush2.msra.mxu0 0.0
      %1247 = vmatprep.subr.mxu0 0.0
      %1248 = vmatpush2.msra.mxu0 0.0
      %1249 = vmatprep.subr.mxu0 0.0
      %1250 = vmatpush2.msra.mxu0 0.0
      %1251 = vmatprep.subr.mxu0 0.0
      %1252 = vmatpush2.msra.mxu0 0.0
      %1253 = vmatprep.subr.mxu0 0.0
      %1254 = vmatpush2.msra.mxu0 0.0
      %1255 = vmatprep.subr.mxu0 0.0
      %1256 = vmatpush2.msra.mxu0 0.0
      %1257 = vmatprep.subr.mxu0 0.0
      %1258 = vmatpush2.msra.mxu0 0.0
      %1259 = vmatprep.subr.mxu0 0.0
      %1260 = vmatpush2.msra.mxu0 0.0
      %1261 = vmatprep.subr.mxu0 0.0
      %1262 = vmatpush2.msra.mxu0 0.0
      %1263 = vmatprep.subr.mxu0 0.0
      %1264 = vmatpush2.msra.mxu0 0.0
      %1265 = vmatprep.subr.mxu0 0.0
      %1266 = vmatpush2.msra.mxu0 0.0
      %1267 = vmatprep.subr.mxu0 0.0
      %1268 = vmatpush2.msra.mxu0 0.0
      %1269 = vmatprep.subr.mxu0 0.0
      %1270 = vmatpush2.msra.mxu0 0.0
      %1271 = vmatprep.mubr.f32.mxu0 0.0
      %1272 = vmatmul.mubr.f32.gmra.mxu0 %v1202
      %v1273 = vpop.f32.mrf.mxu0
      %v1274 = vadd.f32 0.0, %v1273
      %v1275 = vpop.f32.mrf.mxu0
      %v1276 = vadd.f32 0.0, %v1275
      %1277 = vmatprep.mubr.f32.mxu0 0.0
      %1278 = vmatmul.mubr.f32.gmra.mxu0 %v1205
      %v1279 = vpop.f32.mrf.mxu0
      %v1280 = vadd.f32 0.0, %v1279
      %v1281 = vpop.f32.mrf.mxu0
      %v1282 = vadd.f32 0.0, %v1281
      %1283 = vdwg.mxu0
      %v1284 = vadd.f32 %v1185, %v1274
      %v1285 = vadd.f32 %v1187, %v1276
      %v1286 = vadd.f32 %v1191, %v1280
      %v1287 = vadd.f32 %v1193, %v1282
      %v1288 = vld [vmem:[#allocation2] sm:$0xff]
      %v1289 = vld [vmem:[#allocation2 + $0x8] sm:$0xff]
      %v1290 = vld [vmem:[#allocation2 + $0x10] sm:$0xff]
      %v1291 = vld [vmem:[#allocation2 + $0x18] sm:$0xff]
      %v1292 = vld [vmem:[#allocation2 + $0x20] sm:$0xff]
      %v1293 = vld [vmem:[#allocation2 + $0x28] sm:$0xff]
      %s1294 = scalar_lea.vmem %s4, 16
      %v1295 = vld [vmem:[%s1294] sm:$0xff]
      %v1296 = vld [vmem:[%s1294 + $0x8] sm:$0xff]
      %1303 = vrot.lane.b32.xlu0 %v1288, 112
      %v1304 = vpop.permute.xlu0 %1303
      %1305 = vrot.lane.b32.xlu0 %v1289, 112
      %v1306 = vpop.permute.xlu0 %1305
      %1307 = vrot.lane.b32.xlu0 %v1290, 112
      %v1308 = vpop.permute.xlu0 %1307
      %1309 = vrot.lane.b32.xlu0 %v1291, 112
      %v1310 = vpop.permute.xlu0 %1309
      %1311 = vrot.lane.b32.xlu0 %v1292, 112
      %v1312 = vpop.permute.xlu0 %1311
      %1313 = vrot.lane.b32.xlu0 %v1293, 112
      %v1314 = vpop.permute.xlu0 %1313
      %vm1315 = vcmask 916480
      %v1316 = vsel %vm1315, %v1304, %v1306
      %v1317 = vsel %vm1315, %v1306, %v1308
      %v1318 = vsel %vm1315, %v1310, %v1312
      %v1319 = vsel %vm1315, %v1312, %v1314
      %v1325 = vsel %vm765, %v1295, 0
      %v1328 = vsel %vm765, %v1296, 0
      %1330 = vmatprep.subr.mxu0 0.0
      %1331 = vmatpush1.msra.mxu0 0.0
      %1332 = vmatprep.subr.mxu0 0.0
      %1333 = vmatpush1.msra.mxu0 0.0
      %1334 = vmatprep.subr.mxu0 0.0
      %1335 = vmatpush1.msra.mxu0 0.0
      %1336 = vmatprep.subr.mxu0 0.0
      %1337 = vmatpush1.msra.mxu0 0.0
      %1338 = vmatprep.subr.mxu0 0.0
      %1339 = vmatpush1.msra.mxu0 0.0
      %1340 = vmatprep.subr.mxu0 0.0
      %1341 = vmatpush1.msra.mxu0 0.0
      %1342 = vmatprep.subr.mxu0 0.0
      %1343 = vmatpush1.msra.mxu0 0.0
      %1344 = vmatprep.subr.mxu0 0.0
      %1345 = vmatpush1.msra.mxu0 0.0
      %1346 = vmatprep.subr.mxu0 0.0
      %1347 = vmatpush1.msra.mxu0 0.0
      %1348 = vmatprep.subr.mxu0 0.0
      %1349 = vmatpush1.msra.mxu0 0.0
      %1350 = vmatprep.subr.mxu0 0.0
      %1351 = vmatpush1.msra.mxu0 0.0
      %1352 = vmatprep.subr.mxu0 0.0
      %1353 = vmatpush1.msra.mxu0 0.0
      %1354 = vmatprep.subr.mxu0 0.0
      %1355 = vmatpush1.msra.mxu0 0.0
      %1356 = vmatprep.subr.mxu0 0.0
      %1357 = vmatpush1.msra.mxu0 0.0
      %1358 = vmatprep.subr.mxu0 %v1319
      %1359 = vmatpush1.msra.mxu0 %v1318
      %1360 = vmatprep.subr.mxu0 %v1317
      %1361 = vmatpush1.msra.mxu0 %v1316
      %1362 = vmatprep.subr.mxu0 0.0
      %1363 = vmatpush2.msra.mxu0 0.0
      %1364 = vmatprep.subr.mxu0 0.0
      %1365 = vmatpush2.msra.mxu0 0.0
      %1366 = vmatprep.subr.mxu0 0.0
      %1367 = vmatpush2.msra.mxu0 0.0
      %1368 = vmatprep.subr.mxu0 0.0
      %1369 = vmatpush2.msra.mxu0 0.0
      %1370 = vmatprep.subr.mxu0 0.0
      %1371 = vmatpush2.msra.mxu0 0.0
      %1372 = vmatprep.subr.mxu0 0.0
      %1373 = vmatpush2.msra.mxu0 0.0
      %1374 = vmatprep.subr.mxu0 0.0
      %1375 = vmatpush2.msra.mxu0 0.0
      %1376 = vmatprep.subr.mxu0 0.0
      %1377 = vmatpush2.msra.mxu0 0.0
      %1378 = vmatprep.subr.mxu0 0.0
      %1379 = vmatpush2.msra.mxu0 0.0
      %1380 = vmatprep.subr.mxu0 0.0
      %1381 = vmatpush2.msra.mxu0 0.0
      %1382 = vmatprep.subr.mxu0 0.0
      %1383 = vmatpush2.msra.mxu0 0.0
      %1384 = vmatprep.subr.mxu0 0.0
      %1385 = vmatpush2.msra.mxu0 0.0
      %1386 = vmatprep.subr.mxu0 0.0
      %1387 = vmatpush2.msra.mxu0 0.0
      %1388 = vmatprep.subr.mxu0 0.0
      %1389 = vmatpush2.msra.mxu0 0.0
      %1390 = vmatprep.subr.mxu0 0.0
      %1391 = vmatpush2.msra.mxu0 0.0
      %1392 = vmatprep.subr.mxu0 0.0
      %1393 = vmatpush2.msra.mxu0 0.0
      %1394 = vmatprep.mubr.f32.mxu0 0.0
      %1395 = vmatmul.mubr.f32.gmra.mxu0 %v1325
      %v1396 = vpop.f32.mrf.mxu0
      %v1397 = vadd.f32 0.0, %v1396
      %v1398 = vpop.f32.mrf.mxu0
      %v1399 = vadd.f32 0.0, %v1398
      %1400 = vmatprep.mubr.f32.mxu0 0.0
      %1401 = vmatmul.mubr.f32.gmra.mxu0 %v1328
      %v1402 = vpop.f32.mrf.mxu0
      %v1403 = vadd.f32 0.0, %v1402
      %v1404 = vpop.f32.mrf.mxu0
      %v1405 = vadd.f32 0.0, %v1404
      %1406 = vdwg.mxu0
      %v1407 = vadd.f32 %v1284, %v1397
      %v1408 = vadd.f32 %v1285, %v1399
      %v1409 = vadd.f32 %v1286, %v1403
      %v1410 = vadd.f32 %v1287, %v1405
      %s1411 = scalar_lea.vmem %s4, 32
      %v1412 = vld [vmem:[%s1411] sm:$0xff]
      %v1413 = vld [vmem:[%s1411 + $0x8] sm:$0xff]
      %1414 = vrot.lane.b32.xlu0 %v1288, 96
      %v1415 = vpop.permute.xlu0 %1414
      %1416 = vrot.lane.b32.xlu0 %v1289, 96
      %v1417 = vpop.permute.xlu0 %1416
      %1418 = vrot.lane.b32.xlu0 %v1290, 96
      %v1419 = vpop.permute.xlu0 %1418
      %1420 = vrot.lane.b32.xlu0 %v1291, 96
      %v1421 = vpop.permute.xlu0 %1420
      %1422 = vrot.lane.b32.xlu0 %v1292, 96
      %v1423 = vpop.permute.xlu0 %1422
      %1424 = vrot.lane.b32.xlu0 %v1293, 96
      %v1425 = vpop.permute.xlu0 %1424
      %vm1426 = vcmask 785408
      %v1427 = vsel %vm1426, %v1415, %v1417
      %v1428 = vsel %vm1426, %v1417, %v1419
      %v1429 = vsel %vm1426, %v1421, %v1423
      %v1430 = vsel %vm1426, %v1423, %v1425
      %v1436 = vsel %vm765, %v1412, 0
      %v1439 = vsel %vm765, %v1413, 0
      %1441 = vmatprep.subr.mxu0 0.0
      %1442 = vmatpush1.msra.mxu0 0.0
      %1443 = vmatprep.subr.mxu0 0.0
      %1444 = vmatpush1.msra.mxu0 0.0
      %1445 = vmatprep.subr.mxu0 0.0
      %1446 = vmatpush1.msra.mxu0 0.0
      %1447 = vmatprep.subr.mxu0 0.0
      %1448 = vmatpush1.msra.mxu0 0.0
      %1449 = vmatprep.subr.mxu0 0.0
      %1450 = vmatpush1.msra.mxu0 0.0
      %1451 = vmatprep.subr.mxu0 0.0
      %1452 = vmatpush1.msra.mxu0 0.0
      %1453 = vmatprep.subr.mxu0 0.0
      %1454 = vmatpush1.msra.mxu0 0.0
      %1455 = vmatprep.subr.mxu0 0.0
      %1456 = vmatpush1.msra.mxu0 0.0
      %1457 = vmatprep.subr.mxu0 0.0
      %1458 = vmatpush1.msra.mxu0 0.0
      %1459 = vmatprep.subr.mxu0 0.0
      %1460 = vmatpush1.msra.mxu0 0.0
      %1461 = vmatprep.subr.mxu0 0.0
      %1462 = vmatpush1.msra.mxu0 0.0
      %1463 = vmatprep.subr.mxu0 0.0
      %1464 = vmatpush1.msra.mxu0 0.0
      %1465 = vmatprep.subr.mxu0 0.0
      %1466 = vmatpush1.msra.mxu0 0.0
      %1467 = vmatprep.subr.mxu0 0.0
      %1468 = vmatpush1.msra.mxu0 0.0
      %1469 = vmatprep.subr.mxu0 %v1430
      %1470 = vmatpush1.msra.mxu0 %v1429
      %1471 = vmatprep.subr.mxu0 %v1428
      %1472 = vmatpush1.msra.mxu0 %v1427
      %1473 = vmatprep.subr.mxu0 0.0
      %1474 = vmatpush2.msra.mxu0 0.0
      %1475 = vmatprep.subr.mxu0 0.0
      %1476 = vmatpush2.msra.mxu0 0.0
      %1477 = vmatprep.subr.mxu0 0.0
      %1478 = vmatpush2.msra.mxu0 0.0
      %1479 = vmatprep.subr.mxu0 0.0
      %1480 = vmatpush2.msra.mxu0 0.0
      %1481 = vmatprep.subr.mxu0 0.0
      %1482 = vmatpush2.msra.mxu0 0.0
      %1483 = vmatprep.subr.mxu0 0.0
      %1484 = vmatpush2.msra.mxu0 0.0
      %1485 = vmatprep.subr.mxu0 0.0
      %1486 = vmatpush2.msra.mxu0 0.0
      %1487 = vmatprep.subr.mxu0 0.0
      %1488 = vmatpush2.msra.mxu0 0.0
      %1489 = vmatprep.subr.mxu0 0.0
      %1490 = vmatpush2.msra.mxu0 0.0
      %1491 = vmatprep.subr.mxu0 0.0
      %1492 = vmatpush2.msra.mxu0 0.0
      %1493 = vmatprep.subr.mxu0 0.0
      %1494 = vmatpush2.msra.mxu0 0.0
      %1495 = vmatprep.subr.mxu0 0.0
      %1496 = vmatpush2.msra.mxu0 0.0
      %1497 = vmatprep.subr.mxu0 0.0
      %1498 = vmatpush2.msra.mxu0 0.0
      %1499 = vmatprep.subr.mxu0 0.0
      %1500 = vmatpush2.msra.mxu0 0.0
      %1501 = vmatprep.subr.mxu0 0.0
      %1502 = vmatpush2.msra.mxu0 0.0
      %1503 = vmatprep.subr.mxu0 0.0
      %1504 = vmatpush2.msra.mxu0 0.0
      %1505 = vmatprep.mubr.f32.mxu0 0.0
      %1506 = vmatmul.mubr.f32.gmra.mxu0 %v1436
      %v1507 = vpop.f32.mrf.mxu0
      %v1508 = vadd.f32 0.0, %v1507
      %v1509 = vpop.f32.mrf.mxu0
      %v1510 = vadd.f32 0.0, %v1509
      %1511 = vmatprep.mubr.f32.mxu0 0.0
      %1512 = vmatmul.mubr.f32.gmra.mxu0 %v1439
      %v1513 = vpop.f32.mrf.mxu0
      %v1514 = vadd.f32 0.0, %v1513
      %v1515 = vpop.f32.mrf.mxu0
      %v1516 = vadd.f32 0.0, %v1515
      %1517 = vdwg.mxu0
      %v1518 = vadd.f32 %v1407, %v1508
      %v1519 = vadd.f32 %v1408, %v1510
      %v1520 = vadd.f32 %v1409, %v1514
      %v1521 = vadd.f32 %v1410, %v1516
      %s1522 = scalar_lea.vmem %s4, 48
      %v1523 = vld [vmem:[%s1522] sm:$0xff]
      %v1524 = vld [vmem:[%s1522 + $0x8] sm:$0xff]
      %1525 = vrot.lane.b32.xlu0 %v1288, 80
      %v1526 = vpop.permute.xlu0 %1525
      %1527 = vrot.lane.b32.xlu0 %v1289, 80
      %v1528 = vpop.permute.xlu0 %1527
      %1529 = vrot.lane.b32.xlu0 %v1290, 80
      %v1530 = vpop.permute.xlu0 %1529
      %1531 = vrot.lane.b32.xlu0 %v1291, 80
      %v1532 = vpop.permute.xlu0 %1531
      %1533 = vrot.lane.b32.xlu0 %v1292, 80
      %v1534 = vpop.permute.xlu0 %1533
      %1535 = vrot.lane.b32.xlu0 %v1293, 80
      %v1536 = vpop.permute.xlu0 %1535
      %vm1537 = vcmask 654336
      %v1538 = vsel %vm1537, %v1526, %v1528
      %v1539 = vsel %vm1537, %v1528, %v1530
      %v1540 = vsel %vm1537, %v1532, %v1534
      %v1541 = vsel %vm1537, %v1534, %v1536
      %v1547 = vsel %vm765, %v1523, 0
      %v1550 = vsel %vm765, %v1524, 0
      %1552 = vmatprep.subr.mxu0 0.0
      %1553 = vmatpush1.msra.mxu0 0.0
      %1554 = vmatprep.subr.mxu0 0.0
      %1555 = vmatpush1.msra.mxu0 0.0
      %1556 = vmatprep.subr.mxu0 0.0
      %1557 = vmatpush1.msra.mxu0 0.0
      %1558 = vmatprep.subr.mxu0 0.0
      %1559 = vmatpush1.msra.mxu0 0.0
      %1560 = vmatprep.subr.mxu0 0.0
      %1561 = vmatpush1.msra.mxu0 0.0
      %1562 = vmatprep.subr.mxu0 0.0
      %1563 = vmatpush1.msra.mxu0 0.0
      %1564 = vmatprep.subr.mxu0 0.0
      %1565 = vmatpush1.msra.mxu0 0.0
      %1566 = vmatprep.subr.mxu0 0.0
      %1567 = vmatpush1.msra.mxu0 0.0
      %1568 = vmatprep.subr.mxu0 0.0
      %1569 = vmatpush1.msra.mxu0 0.0
      %1570 = vmatprep.subr.mxu0 0.0
      %1571 = vmatpush1.msra.mxu0 0.0
      %1572 = vmatprep.subr.mxu0 0.0
      %1573 = vmatpush1.msra.mxu0 0.0
      %1574 = vmatprep.subr.mxu0 0.0
      %1575 = vmatpush1.msra.mxu0 0.0
      %1576 = vmatprep.subr.mxu0 0.0
      %1577 = vmatpush1.msra.mxu0 0.0
      %1578 = vmatprep.subr.mxu0 0.0
      %1579 = vmatpush1.msra.mxu0 0.0
      %1580 = vmatprep.subr.mxu0 %v1541
      %1581 = vmatpush1.msra.mxu0 %v1540
      %1582 = vmatprep.subr.mxu0 %v1539
      %1583 = vmatpush1.msra.mxu0 %v1538
      %1584 = vmatprep.subr.mxu0 0.0
      %1585 = vmatpush2.msra.mxu0 0.0
      %1586 = vmatprep.subr.mxu0 0.0
      %1587 = vmatpush2.msra.mxu0 0.0
      %1588 = vmatprep.subr.mxu0 0.0
      %1589 = vmatpush2.msra.mxu0 0.0
      %1590 = vmatprep.subr.mxu0 0.0
      %1591 = vmatpush2.msra.mxu0 0.0
      %1592 = vmatprep.subr.mxu0 0.0
      %1593 = vmatpush2.msra.mxu0 0.0
      %1594 = vmatprep.subr.mxu0 0.0
      %1595 = vmatpush2.msra.mxu0 0.0
      %1596 = vmatprep.subr.mxu0 0.0
      %1597 = vmatpush2.msra.mxu0 0.0
      %1598 = vmatprep.subr.mxu0 0.0
      %1599 = vmatpush2.msra.mxu0 0.0
      %1600 = vmatprep.subr.mxu0 0.0
      %1601 = vmatpush2.msra.mxu0 0.0
      %1602 = vmatprep.subr.mxu0 0.0
      %1603 = vmatpush2.msra.mxu0 0.0
      %1604 = vmatprep.subr.mxu0 0.0
      %1605 = vmatpush2.msra.mxu0 0.0
      %1606 = vmatprep.subr.mxu0 0.0
      %1607 = vmatpush2.msra.mxu0 0.0
      %1608 = vmatprep.subr.mxu0 0.0
      %1609 = vmatpush2.msra.mxu0 0.0
      %1610 = vmatprep.subr.mxu0 0.0
      %1611 = vmatpush2.msra.mxu0 0.0
      %1612 = vmatprep.subr.mxu0 0.0
      %1613 = vmatpush2.msra.mxu0 0.0
      %1614 = vmatprep.subr.mxu0 0.0
      %1615 = vmatpush2.msra.mxu0 0.0
      %1616 = vmatprep.mubr.f32.mxu0 0.0
      %1617 = vmatmul.mubr.f32.gmra.mxu0 %v1547
      %v1618 = vpop.f32.mrf.mxu0
      %v1619 = vadd.f32 0.0, %v1618
      %v1620 = vpop.f32.mrf.mxu0
      %v1621 = vadd.f32 0.0, %v1620
      %1622 = vmatprep.mubr.f32.mxu0 0.0
      %1623 = vmatmul.mubr.f32.gmra.mxu0 %v1550
      %v1624 = vpop.f32.mrf.mxu0
      %v1625 = vadd.f32 0.0, %v1624
      %v1626 = vpop.f32.mrf.mxu0
      %v1627 = vadd.f32 0.0, %v1626
      %1628 = vdwg.mxu0
      %v1629 = vadd.f32 %v1518, %v1619
      %v1630 = vadd.f32 %v1519, %v1621
      %v1631 = vadd.f32 %v1520, %v1625
      %v1632 = vadd.f32 %v1521, %v1627
      %s1633 = scalar_lea.vmem %s4, 64
      %v1634 = vld [vmem:[%s1633] sm:$0xff]
      %v1635 = vld [vmem:[%s1633 + $0x8] sm:$0xff]
      %1636 = vrot.lane.b32.xlu0 %v1288, 64
      %v1637 = vpop.permute.xlu0 %1636
      %1638 = vrot.lane.b32.xlu0 %v1289, 64
      %v1639 = vpop.permute.xlu0 %1638
      %1640 = vrot.lane.b32.xlu0 %v1290, 64
      %v1641 = vpop.permute.xlu0 %1640
      %1642 = vrot.lane.b32.xlu0 %v1291, 64
      %v1643 = vpop.permute.xlu0 %1642
      %1644 = vrot.lane.b32.xlu0 %v1292, 64
      %v1645 = vpop.permute.xlu0 %1644
      %1646 = vrot.lane.b32.xlu0 %v1293, 64
      %v1647 = vpop.permute.xlu0 %1646
      %vm1648 = vcmask 523264
      %v1649 = vsel %vm1648, %v1637, %v1639
      %v1650 = vsel %vm1648, %v1639, %v1641
      %v1651 = vsel %vm1648, %v1643, %v1645
      %v1652 = vsel %vm1648, %v1645, %v1647
      %v1658 = vsel %vm765, %v1634, 0
      %v1661 = vsel %vm765, %v1635, 0
      %1663 = vmatprep.subr.mxu0 0.0
      %1664 = vmatpush1.msra.mxu0 0.0
      %1665 = vmatprep.subr.mxu0 0.0
      %1666 = vmatpush1.msra.mxu0 0.0
      %1667 = vmatprep.subr.mxu0 0.0
      %1668 = vmatpush1.msra.mxu0 0.0
      %1669 = vmatprep.subr.mxu0 0.0
      %1670 = vmatpush1.msra.mxu0 0.0
      %1671 = vmatprep.subr.mxu0 0.0
      %1672 = vmatpush1.msra.mxu0 0.0
      %1673 = vmatprep.subr.mxu0 0.0
      %1674 = vmatpush1.msra.mxu0 0.0
      %1675 = vmatprep.subr.mxu0 0.0
      %1676 = vmatpush1.msra.mxu0 0.0
      %1677 = vmatprep.subr.mxu0 0.0
      %1678 = vmatpush1.msra.mxu0 0.0
      %1679 = vmatprep.subr.mxu0 0.0
      %1680 = vmatpush1.msra.mxu0 0.0
      %1681 = vmatprep.subr.mxu0 0.0
      %1682 = vmatpush1.msra.mxu0 0.0
      %1683 = vmatprep.subr.mxu0 0.0
      %1684 = vmatpush1.msra.mxu0 0.0
      %1685 = vmatprep.subr.mxu0 0.0
      %1686 = vmatpush1.msra.mxu0 0.0
      %1687 = vmatprep.subr.mxu0 0.0
      %1688 = vmatpush1.msra.mxu0 0.0
      %1689 = vmatprep.subr.mxu0 0.0
      %1690 = vmatpush1.msra.mxu0 0.0
      %1691 = vmatprep.subr.mxu0 %v1652
      %1692 = vmatpush1.msra.mxu0 %v1651
      %1693 = vmatprep.subr.mxu0 %v1650
      %1694 = vmatpush1.msra.mxu0 %v1649
      %1695 = vmatprep.subr.mxu0 0.0
      %1696 = vmatpush2.msra.mxu0 0.0
      %1697 = vmatprep.subr.mxu0 0.0
      %1698 = vmatpush2.msra.mxu0 0.0
      %1699 = vmatprep.subr.mxu0 0.0
      %1700 = vmatpush2.msra.mxu0 0.0
      %1701 = vmatprep.subr.mxu0 0.0
      %1702 = vmatpush2.msra.mxu0 0.0
      %1703 = vmatprep.subr.mxu0 0.0
      %1704 = vmatpush2.msra.mxu0 0.0
      %1705 = vmatprep.subr.mxu0 0.0
      %1706 = vmatpush2.msra.mxu0 0.0
      %1707 = vmatprep.subr.mxu0 0.0
      %1708 = vmatpush2.msra.mxu0 0.0
      %1709 = vmatprep.subr.mxu0 0.0
      %1710 = vmatpush2.msra.mxu0 0.0
      %1711 = vmatprep.subr.mxu0 0.0
      %1712 = vmatpush2.msra.mxu0 0.0
      %1713 = vmatprep.subr.mxu0 0.0
      %1714 = vmatpush2.msra.mxu0 0.0
      %1715 = vmatprep.subr.mxu0 0.0
      %1716 = vmatpush2.msra.mxu0 0.0
      %1717 = vmatprep.subr.mxu0 0.0
      %1718 = vmatpush2.msra.mxu0 0.0
      %1719 = vmatprep.subr.mxu0 0.0
      %1720 = vmatpush2.msra.mxu0 0.0
      %1721 = vmatprep.subr.mxu0 0.0
      %1722 = vmatpush2.msra.mxu0 0.0
      %1723 = vmatprep.subr.mxu0 0.0
      %1724 = vmatpush2.msra.mxu0 0.0
      %1725 = vmatprep.subr.mxu0 0.0
      %1726 = vmatpush2.msra.mxu0 0.0
      %1727 = vmatprep.mubr.f32.mxu0 0.0
      %1728 = vmatmul.mubr.f32.gmra.mxu0 %v1658
      %v1729 = vpop.f32.mrf.mxu0
      %v1730 = vadd.f32 0.0, %v1729
      %v1731 = vpop.f32.mrf.mxu0
      %v1732 = vadd.f32 0.0, %v1731
      %1733 = vmatprep.mubr.f32.mxu0 0.0
      %1734 = vmatmul.mubr.f32.gmra.mxu0 %v1661
      %v1735 = vpop.f32.mrf.mxu0
      %v1736 = vadd.f32 0.0, %v1735
      %v1737 = vpop.f32.mrf.mxu0
      %v1738 = vadd.f32 0.0, %v1737
      %1739 = vdwg.mxu0
      %v1740 = vadd.f32 %v1629, %v1730
      %v1741 = vadd.f32 %v1630, %v1732
      %v1742 = vadd.f32 %v1631, %v1736
      %v1743 = vadd.f32 %v1632, %v1738
      %v1744 = vmax.f32 %v1740, 0.0
      %v1745 = vmax.f32 %v1741, 0.0
      %v1746 = vmax.f32 %v1742, 0.0
      %v1747 = vmax.f32 %v1743, 0.0
      %1748 = vst [vmem:[%s406] sm:$0xff] %v1744
      %1749 = vst [vmem:[%s406 + $0x8] sm:$0xff] %v1745
      %1750 = vst [vmem:[%s406 + $0x10] sm:$0xff] %v1746
      %1751 = vst [vmem:[%s406 + $0x18] sm:$0xff] %v1747
      %p1752 = scmp.lt.s32.totalorder %s22, 1
      %s1753 = scalar_select %p1752, %s22, 1
      %s1754 = smul.addr %s1753, 4
      %s1755 = smul.addr %s1754, 8
      %s1756 = scalar_lea.vmem %s11, %s1755
      // Predicated region
      $region65: #{tcn_gcn_unit_forward.3} parent=63 // pred_check
        %p1757 = pneg %p281
      $region66: #{tcn_gcn_unit_forward.3} parent=63 // pred_check_branch
        %1759 = sbr.rel (%p1757) target = $region68
      $region67: #{tcn_gcn_unit_forward.3} parent=63 // pred_region
        _
      $region68: #{tcn_gcn_unit_forward.3} parent=63 // pred_fallthru
        _
    $region64: #{tcn_gcn_unit_forward.3} parent=5 // pred_fallthru
      _
    %p1760 = scmp.le.s32.totalorder 2, %s17
    // Predicated region
    $region69: #{tcn_gcn_unit_forward.3} parent=5 // pred_check
      %p1761 = pneg %p1760
    $region70: #{tcn_gcn_unit_forward.3} parent=5 // pred_check_branch
      %1763 = sbr.rel (%p1761) target = $region72
    $region71: #{tcn_gcn_unit_forward.3} parent=5 // pred_region
      %s1764 = ssub.s32 %s17, 2
      // Predicated region
      $region73: #{tcn_gcn_unit_forward.3} parent=71 // pred_check
        %p1765 = pneg %p287
      $region74: #{tcn_gcn_unit_forward.3} parent=71 // pred_check_branch
        %1767 = sbr.rel (%p1765) target = $region76
      $region75: #{tcn_gcn_unit_forward.3} parent=71 // pred_region
        %p1768 = scmp.lt.s32.totalorder %s23, 1
        %s1769 = scalar_select %p1768, %s23, 1
        %s1770 = smul.addr %s1769, 4
        %s1771 = smul.addr %s1770, 8
        %s1772 = scalar_lea.vmem %s11, %s1771
      $region76: #{tcn_gcn_unit_forward.3} parent=71 // pred_fallthru
        _
    $region72: #{tcn_gcn_unit_forward.3} parent=5 // pred_fallthru
      _
  $region6: #{tcn_gcn_unit_forward.3} parent=0 // loop_footer
    %s21 = sadd.s32 1, %s17
  $region7: #{tcn_gcn_unit_forward.3} parent=0 // loop_footer_branch
    %16 = sbr.rel target = $region3
  $region8: #{tcn_gcn_unit_forward.3} parent=0 // loop_exit
    _

</llo_original>
